<compile_context>
chip_gen: v5e
topology: v5e:2x2
jax: 0.10.0
libtpu: 0.0.40
codegen_flags: <defaults>
</compile_context>

<pallas_src>
import functools

import jax
import jax.numpy as jnp
from jax import lax
from jax.experimental import pallas as pl
from jax.experimental.pallas import tpu as pltpu

BN_EPS = 1e-5


def _resblock_kernel(x_ref, w1_ref, g1_ref, be1_ref, w2_ref, g2_ref, be2_ref,
                     out_ref, *, N, H, W, CIN, C):
    HW = H * W
    inv_count = 1.0 / float(N * HW)

    x = x_ref[...]                                   # (N*CIN, HW), NCHW-flat

    # Column masks (depend only on the lane's x-coordinate inside the image).
    lane = lax.broadcasted_iota(jnp.int32, (1, HW), 1)
    xi = lane % W
    not_first_col = (xi != 0).astype(jnp.float32)    # kills dx=+1 row-wraps
    not_last_col = (xi != (W - 1)).astype(jnp.float32)  # kills dx=-1 row-wraps

    def shift_lanes(v, d):
        # out[:, s] = v[:, s + d], zero outside [0, HW).  Static lane slice +
        # concat with a zero strip (cheap; replaces roll/halo-pad scratch).
        if d == 0:
            return v
        rows = v.shape[0]
        if d > 0:
            return jnp.concatenate(
                [v[:, d:], jnp.zeros((rows, d), v.dtype)], axis=1)
        return jnp.concatenate(
            [jnp.zeros((rows, -d), v.dtype), v[:, :HW + d]], axis=1)

    def conv3x3(v, w_ref):
        # v: (rows_in, HW); w_ref: (9, rows_out, rows_in) block-diag taps.
        # 9 accumulating MXU dots; no im2col patch tensor is materialized.
        v_dx = {-1: v * not_last_col, 0: v, 1: v * not_first_col}
        acc = None
        for ky in range(3):
            for kx in range(3):
                dy, dx = ky - 1, kx - 1
                shifted = shift_lanes(v_dx[dx], dy * W + dx)
                contrib = jnp.dot(w_ref[ky * 3 + kx], shifted,
                                  preferred_element_type=jnp.float32)
                acc = contrib if acc is None else acc + contrib
        return acc

    def bn_scale_shift(acc, gamma, beta, reps, ch):
        # acc: (reps*ch, HW); returns per-row (scale, shift), each (reps*ch, 1)
        s = jnp.sum(acc, axis=1, keepdims=True)           # (reps*ch, 1)
        ss = jnp.sum(acc * acc, axis=1, keepdims=True)
        sc, ssc = s[0:ch, :], ss[0:ch, :]
        for i in range(1, reps):                          # combine across batch
            sc = sc + s[i * ch:(i + 1) * ch, :]
            ssc = ssc + ss[i * ch:(i + 1) * ch, :]
        mean = sc * inv_count
        # clamp: single-pass E[x^2]-E[x]^2 can go slightly negative in f32
        var = jnp.maximum(ssc * inv_count - mean * mean, 0.0)
        scale_c = gamma * lax.rsqrt(var + BN_EPS)         # (ch, 1)
        shift_c = beta - mean * scale_c
        if reps > 1:
            scale_c = jnp.concatenate([scale_c] * reps, axis=0)
            shift_c = jnp.concatenate([shift_c] * reps, axis=0)
        return scale_c, shift_c

    # ---- conv1 (bias folded out under training-mode BN) + bn1 + relu ----
    acc1 = conv3x3(x, w1_ref)                             # (N*C, HW)
    scale1, shift1 = bn_scale_shift(acc1, g1_ref[...], be1_ref[...], N, C)
    h1 = jnp.maximum(acc1 * scale1 + shift1, 0.0)

    # ---- conv2 + bn2 + residual + relu ----
    acc2 = conv3x3(h1, w2_ref)                            # (N*CIN, HW)
    scale2, shift2 = bn_scale_shift(acc2, g2_ref[...], be2_ref[...], N, CIN)
    out_ref[...] = jnp.maximum(acc2 * scale2 + shift2 + x, 0.0)


def resblock2d_pallas(x_nchw, params):
    x_nchw = x_nchw.astype(jnp.float32)
    N, CIN, H, W = x_nchw.shape
    C = params["w1"].shape[0]
    HW = H * W

    # NCHW-flat, pure metadata reshape (no transpose/pad pass in XLA).
    x_flat = x_nchw.reshape(N * CIN, HW)

    # Per-tap, batch-block-diagonal weights:
    #   row n*Cout + co, col n*Cin + ci  ->  w[co, ci, ky, kx]
    eye_n = jnp.eye(N, dtype=jnp.float32)
    w1 = params["w1"].astype(jnp.float32)                 # (C, CIN, 3, 3)
    w2 = params["w2"].astype(jnp.float32)                 # (CIN, C, 3, 3)
    w1_bd = jnp.stack([jnp.kron(eye_n, w1[:, :, ky, kx])
                       for ky in range(3) for kx in range(3)])  # (9, N*C, N*CIN)
    w2_bd = jnp.stack([jnp.kron(eye_n, w2[:, :, ky, kx])
                       for ky in range(3) for kx in range(3)])  # (9, N*CIN, N*C)

    g1 = params["g1"].reshape(C, 1).astype(jnp.float32)
    be1 = params["be1"].reshape(C, 1).astype(jnp.float32)
    g2 = params["g2"].reshape(CIN, 1).astype(jnp.float32)
    be2 = params["be2"].reshape(CIN, 1).astype(jnp.float32)

    kernel = functools.partial(_resblock_kernel, N=N, H=H, W=W, CIN=CIN, C=C)

    args = (x_flat, w1_bd, g1, be1, w2_bd, g2, be2)
    in_specs = [pl.BlockSpec(a.shape, lambda i, nd=a.ndim: (0,) * nd)
                for a in args]
    # (N*CIN, H*W): lane dim a multiple of 128 -> unmasked stores.
    out_spec = pl.BlockSpec((N * CIN, HW), lambda i: (0, 0))

    flops = 4 * 9 * N * HW * CIN * C                      # two 3x3 convs
    bytes_accessed = 4 * (x_flat.size + w1_bd.size + w2_bd.size
                          + g1.size + be1.size + g2.size + be2.size
                          + N * CIN * HW)

    out_flat = pl.pallas_call(
        kernel,
        out_shape=jax.ShapeDtypeStruct((N * CIN, HW), jnp.float32),
        grid=(1,),
        in_specs=in_specs,
        out_specs=out_spec,
        compiler_params=pltpu.CompilerParams(
            dimension_semantics=("arbitrary",)),
        cost_estimate=pl.CostEstimate(flops=flops,
                                      transcendentals=2 * (C + CIN),
                                      bytes_accessed=bytes_accessed),
    )(*args)

    # Output is already NCHW-ordered: pure metadata reshape.
    return out_flat.reshape(N, CIN, H, W)


# -------- deterministic parameter init (mirrors PyTorch defaults) --------
def init_params(key, in_channel, channel):
    k1, k2, k3, k4 = jax.random.split(key, 4)
    bound1 = 1.0 / (in_channel * 9) ** 0.5
    bound2 = 1.0 / (channel * 9) ** 0.5
    return dict(
        w1=jax.random.uniform(k1, (channel, in_channel, 3, 3), jnp.float32, -bound1, bound1),
        b1=jax.random.uniform(k2, (channel,), jnp.float32, -bound1, bound1),
        g1=jnp.ones((channel,), jnp.float32),
        be1=jnp.zeros((channel,), jnp.float32),
        w2=jax.random.uniform(k3, (in_channel, channel, 3, 3), jnp.float32, -bound2, bound2),
        b2=jax.random.uniform(k4, (in_channel,), jnp.float32, -bound2, bound2),
        g2=jnp.ones((in_channel,), jnp.float32),
        be2=jnp.zeros((in_channel,), jnp.float32),
    )


# -------- pure-JAX reference (for correctness check, biases included) --------
def resblock2d_ref(x, p):
    def conv(y, w, b):
        y = lax.conv_general_dilated(y, w, (1, 1), ((1, 1), (1, 1)),
                                     dimension_numbers=("NCHW", "OIHW", "NCHW"))
        return y + b[None, :, None, None]

    def bn(y, g, be):
        m = jnp.mean(y, axis=(0, 2, 3), keepdims=True)
        v = jnp.mean((y - m) ** 2, axis=(0, 2, 3), keepdims=True)
        return (y - m) * lax.rsqrt(v + BN_EPS) * g[None, :, None, None] + be[None, :, None, None]

    x = x.astype(jnp.float32)
    h = jnp.maximum(bn(conv(x, p["w1"], p["b1"]), p["g1"], p["be1"]), 0.0)
    h = bn(conv(h, p["w2"], p["b2"]), p["g2"], p["be2"])
    return jnp.maximum(h + x, 0.0)


if __name__ == "__main__":
    key = jax.random.PRNGKey(0)
    kx, kp = jax.random.split(key)

    N, CIN, H, W = 2, 4, 16, 16   # small NCHW input, like the PyTorch module sees
    CHANNEL = 8

    x = jax.random.normal(kx, (N, CIN, H, W), jnp.float32)
    params = init_params(kp, CIN, CHANNEL)

    out = resblock2d_pallas(x, params)
    out = jax.block_until_ready(out)

    ref = jax.block_until_ready(resblock2d_ref(x, params))
    assert out.shape == (N, CIN, H, W)
    assert jnp.allclose(out, ref, rtol=1e-4, atol=1e-4), \
        f"max abs err {float(jnp.max(jnp.abs(out - ref)))}"

    print("KERNEL_OK")
</pallas_src>

<mosaic_0001>
module attributes {stable_mosaic.version = 11 : i64} {
  func.func @_resblock_kernel(%arg0: i32, %arg1: memref<8x256xf32, #tpu.memory_space<vmem>>, %arg2: memref<9x16x8xf32, #tpu.memory_space<vmem>>, %arg3: memref<8x1xf32, #tpu.memory_space<vmem>>, %arg4: memref<8x1xf32, #tpu.memory_space<vmem>>, %arg5: memref<9x8x16xf32, #tpu.memory_space<vmem>>, %arg6: memref<4x1xf32, #tpu.memory_space<vmem>>, %arg7: memref<4x1xf32, #tpu.memory_space<vmem>>, %arg8: memref<8x256xf32, #tpu.memory_space<vmem>>) attributes {dimension_semantics = [#tpu.dimension_semantics<arbitrary>], iteration_bounds = array<i64: 1>, scalar_prefetch = 0 : i64, scratch_operands = 0 : i64, tpu.core_type = #tpu.core_type<tc>, window_params = [{pipeline_mode = #tpu.pipeline_mode<synchronous>, transform_indices = @transform_0, window_bounds = array<i64: 8, 256>}, {pipeline_mode = #tpu.pipeline_mode<synchronous>, transform_indices = @transform_1, window_bounds = array<i64: 9, 16, 8>}, {pipeline_mode = #tpu.pipeline_mode<synchronous>, transform_indices = @transform_2, window_bounds = array<i64: 8, 1>}, {pipeline_mode = #tpu.pipeline_mode<synchronous>, transform_indices = @transform_3, window_bounds = array<i64: 8, 1>}, {pipeline_mode = #tpu.pipeline_mode<synchronous>, transform_indices = @transform_4, window_bounds = array<i64: 9, 8, 16>}, {pipeline_mode = #tpu.pipeline_mode<synchronous>, transform_indices = @transform_5, window_bounds = array<i64: 4, 1>}, {pipeline_mode = #tpu.pipeline_mode<synchronous>, transform_indices = @transform_6, window_bounds = array<i64: 4, 1>}, {pipeline_mode = #tpu.pipeline_mode<synchronous>, transform_indices = @transform_7, window_bounds = array<i64: 8, 256>}]} {
    %c0 = arith.constant 0 : index
    %c0_0 = arith.constant 0 : index
    %0 = vector.load %arg1[%c0, %c0_0] : memref<8x256xf32, #tpu.memory_space<vmem>>, vector<8x256xf32>
    %1 = tpu.iota {dimensions = array<i32: 1>} : vector<1x256xi32>
    %c16_i32 = arith.constant 16 : i32
    %c0_i32 = arith.constant 0 : i32
    %2 = arith.cmpi eq, %c16_i32, %c0_i32 : i32
    %c1_i32 = arith.constant 1 : i32
    %3 = arith.select %2, %c1_i32, %c16_i32 : i32
    %4 = vector.broadcast %3 : i32 to vector<1x256xi32>
    %5 = arith.remsi %1, %4 : vector<1x256xi32>
    %c0_i32_1 = arith.constant 0 : i32
    %6 = vector.broadcast %c0_i32_1 : i32 to vector<1x256xi32>
    %7 = arith.cmpi ne, %5, %6 : vector<1x256xi32>
    %c0_i32_2 = arith.constant 0 : i32
    %8 = vector.broadcast %c0_i32_2 : i32 to vector<1x256xi32>
    %9 = arith.cmpi slt, %5, %8 : vector<1x256xi32>
    %c0_i32_3 = arith.constant 0 : i32
    %10 = arith.cmpi slt, %3, %c0_i32_3 : i32
    %11 = vector.broadcast %10 : i1 to vector<1x256xi1>
    %12 = vector.broadcast %11 : vector<1x256xi1> to vector<1x256xi1>
    %13 = arith.xori %9, %12 : vector<1x256xi1>
    %14 = arith.andi %13, %7 : vector<1x256xi1>
    %15 = vector.broadcast %3 : i32 to vector<1x256xi32>
    %16 = arith.addi %5, %15 : vector<1x256xi32>
    %17 = arith.select %14, %16, %5 : vector<1x256xi1>, vector<1x256xi32>
    %c0_i32_4 = arith.constant 0 : i32
    %18 = vector.broadcast %c0_i32_4 : i32 to vector<1x256xi32>
    %19 = arith.cmpi ne, %17, %18 : vector<1x256xi32>
    %20 = arith.extui %19 : vector<1x256xi1> to vector<1x256xi32>
    %21 = arith.sitofp %20 : vector<1x256xi32> to vector<1x256xf32>
    %c15_i32 = arith.constant 15 : i32
    %22 = vector.broadcast %c15_i32 : i32 to vector<1x256xi32>
    %23 = arith.cmpi ne, %17, %22 : vector<1x256xi32>
    %24 = arith.extui %23 : vector<1x256xi1> to vector<1x256xi32>
    %25 = arith.sitofp %24 : vector<1x256xi32> to vector<1x256xf32>
    %26 = vector.broadcast %25 : vector<1x256xf32> to vector<8x256xf32>
    %27 = arith.mulf %0, %26 : vector<8x256xf32>
    %28 = vector.broadcast %21 : vector<1x256xf32> to vector<8x256xf32>
    %29 = arith.mulf %0, %28 : vector<8x256xf32>
    %cst = arith.constant 0.000000e+00 : f32
    %30 = vector.broadcast %cst : f32 to vector<8x17xf32>
    %31 = vector.extract_strided_slice %27 {offsets = [0, 0], sizes = [8, 239], strides = [1, 1]} : vector<8x256xf32> to vector<8x239xf32>
    %32 = tpu.concatenate %30, %31 in 1 : vector<8x17xf32>, vector<8x239xf32> -> vector<8x256xf32>
    %c0_5 = arith.constant 0 : index
    %c0_6 = arith.constant 0 : index
    %c0_7 = arith.constant 0 : index
    %33 = vector.load %arg2[%c0_5, %c0_6, %c0_7] : memref<9x16x8xf32, #tpu.memory_space<vmem>>, vector<1x16x8xf32>
    %34 = vector.shape_cast %33 : vector<1x16x8xf32> to vector<16x8xf32>
    %cst_8 = arith.constant dense<0.000000e+00> : vector<16x256xf32>
    %35 = tpu.matmul %34, %32, %cst_8 {dimension_numbers = #tpu.dot_dimension_numbers<[1], [0], [0], [1], [0, 0, 1, 1], [], []>} : vector<16x8xf32>, vector<8x256xf32>, vector<16x256xf32> -> vector<16x256xf32>
    %cst_9 = arith.constant 0.000000e+00 : f32
    %36 = vector.broadcast %cst_9 : f32 to vector<8x16xf32>
    %37 = vector.extract_strided_slice %0 {offsets = [0, 0], sizes = [8, 240], strides = [1, 1]} : vector<8x256xf32> to vector<8x240xf32>
    %38 = tpu.concatenate %36, %37 in 1 : vector<8x16xf32>, vector<8x240xf32> -> vector<8x256xf32>
    %c1 = arith.constant 1 : index
    %c0_10 = arith.constant 0 : index
    %c0_11 = arith.constant 0 : index
    %39 = vector.load %arg2[%c1, %c0_10, %c0_11] : memref<9x16x8xf32, #tpu.memory_space<vmem>>, vector<1x16x8xf32>
    %40 = vector.shape_cast %39 : vector<1x16x8xf32> to vector<16x8xf32>
    %cst_12 = arith.constant dense<0.000000e+00> : vector<16x256xf32>
    %41 = tpu.matmul %40, %38, %cst_12 {dimension_numbers = #tpu.dot_dimension_numbers<[1], [0], [0], [1], [0, 0, 1, 1], [], []>} : vector<16x8xf32>, vector<8x256xf32>, vector<16x256xf32> -> vector<16x256xf32>
    %42 = arith.addf %35, %41 : vector<16x256xf32>
    %cst_13 = arith.constant 0.000000e+00 : f32
    %43 = vector.broadcast %cst_13 : f32 to vector<8x15xf32>
    %44 = vector.extract_strided_slice %29 {offsets = [0, 0], sizes = [8, 241], strides = [1, 1]} : vector<8x256xf32> to vector<8x241xf32>
    %45 = tpu.concatenate %43, %44 in 1 : vector<8x15xf32>, vector<8x241xf32> -> vector<8x256xf32>
    %c2 = arith.constant 2 : index
    %c0_14 = arith.constant 0 : index
    %c0_15 = arith.constant 0 : index
    %46 = vector.load %arg2[%c2, %c0_14, %c0_15] : memref<9x16x8xf32, #tpu.memory_space<vmem>>, vector<1x16x8xf32>
    %47 = vector.shape_cast %46 : vector<1x16x8xf32> to vector<16x8xf32>
    %cst_16 = arith.constant dense<0.000000e+00> : vector<16x256xf32>
    %48 = tpu.matmul %47, %45, %cst_16 {dimension_numbers = #tpu.dot_dimension_numbers<[1], [0], [0], [1], [0, 0, 1, 1], [], []>} : vector<16x8xf32>, vector<8x256xf32>, vector<16x256xf32> -> vector<16x256xf32>
    %49 = arith.addf %42, %48 : vector<16x256xf32>
    %cst_17 = arith.constant 0.000000e+00 : f32
    %50 = vector.broadcast %cst_17 : f32 to vector<8x1xf32>
    %51 = vector.extract_strided_slice %27 {offsets = [0, 0], sizes = [8, 255], strides = [1, 1]} : vector<8x256xf32> to vector<8x255xf32>
    %52 = tpu.concatenate %50, %51 in 1 : vector<8x1xf32>, vector<8x255xf32> -> vector<8x256xf32>
    %c3 = arith.constant 3 : index
    %c0_18 = arith.constant 0 : index
    %c0_19 = arith.constant 0 : index
    %53 = vector.load %arg2[%c3, %c0_18, %c0_19] : memref<9x16x8xf32, #tpu.memory_space<vmem>>, vector<1x16x8xf32>
    %54 = vector.shape_cast %53 : vector<1x16x8xf32> to vector<16x8xf32>
    %cst_20 = arith.constant dense<0.000000e+00> : vector<16x256xf32>
    %55 = tpu.matmul %54, %52, %cst_20 {dimension_numbers = #tpu.dot_dimension_numbers<[1], [0], [0], [1], [0, 0, 1, 1], [], []>} : vector<16x8xf32>, vector<8x256xf32>, vector<16x256xf32> -> vector<16x256xf32>
    %56 = arith.addf %49, %55 : vector<16x256xf32>
    %c4 = arith.constant 4 : index
    %c0_21 = arith.constant 0 : index
    %c0_22 = arith.constant 0 : index
    %57 = vector.load %arg2[%c4, %c0_21, %c0_22] : memref<9x16x8xf32, #tpu.memory_space<vmem>>, vector<1x16x8xf32>
    %58 = vector.shape_cast %57 : vector<1x16x8xf32> to vector<16x8xf32>
    %cst_23 = arith.constant dense<0.000000e+00> : vector<16x256xf32>
    %59 = tpu.matmul %58, %0, %cst_23 {dimension_numbers = #tpu.dot_dimension_numbers<[1], [0], [0], [1], [0, 0, 1, 1], [], []>} : vector<16x8xf32>, vector<8x256xf32>, vector<16x256xf32> -> vector<16x256xf32>
    %60 = arith.addf %56, %59 : vector<16x256xf32>
    %61 = vector.extract_strided_slice %29 {offsets = [0, 1], sizes = [8, 255], strides = [1, 1]} : vector<8x256xf32> to vector<8x255xf32>
    %cst_24 = arith.constant 0.000000e+00 : f32
    %62 = vector.broadcast %cst_24 : f32 to vector<8x1xf32>
    %63 = tpu.concatenate %61, %62 in 1 : vector<8x255xf32>, vector<8x1xf32> -> vector<8x256xf32>
    %c5 = arith.constant 5 : index
    %c0_25 = arith.constant 0 : index
    %c0_26 = arith.constant 0 : index
    %64 = vector.load %arg2[%c5, %c0_25, %c0_26] : memref<9x16x8xf32, #tpu.memory_space<vmem>>, vector<1x16x8xf32>
    %65 = vector.shape_cast %64 : vector<1x16x8xf32> to vector<16x8xf32>
    %cst_27 = arith.constant dense<0.000000e+00> : vector<16x256xf32>
    %66 = tpu.matmul %65, %63, %cst_27 {dimension_numbers = #tpu.dot_dimension_numbers<[1], [0], [0], [1], [0, 0, 1, 1], [], []>} : vector<16x8xf32>, vector<8x256xf32>, vector<16x256xf32> -> vector<16x256xf32>
    %67 = arith.addf %60, %66 : vector<16x256xf32>
    %68 = vector.extract_strided_slice %27 {offsets = [0, 15], sizes = [8, 241], strides = [1, 1]} : vector<8x256xf32> to vector<8x241xf32>
    %cst_28 = arith.constant 0.000000e+00 : f32
    %69 = vector.broadcast %cst_28 : f32 to vector<8x15xf32>
    %70 = tpu.concatenate %68, %69 in 1 : vector<8x241xf32>, vector<8x15xf32> -> vector<8x256xf32>
    %c6 = arith.constant 6 : index
    %c0_29 = arith.constant 0 : index
    %c0_30 = arith.constant 0 : index
    %71 = vector.load %arg2[%c6, %c0_29, %c0_30] : memref<9x16x8xf32, #tpu.memory_space<vmem>>, vector<1x16x8xf32>
    %72 = vector.shape_cast %71 : vector<1x16x8xf32> to vector<16x8xf32>
    %cst_31 = arith.constant dense<0.000000e+00> : vector<16x256xf32>
    %73 = tpu.matmul %72, %70, %cst_31 {dimension_numbers = #tpu.dot_dimension_numbers<[1], [0], [0], [1], [0, 0, 1, 1], [], []>} : vector<16x8xf32>, vector<8x256xf32>, vector<16x256xf32> -> vector<16x256xf32>
    %74 = arith.addf %67, %73 : vector<16x256xf32>
    %75 = vector.extract_strided_slice %0 {offsets = [0, 16], sizes = [8, 240], strides = [1, 1]} : vector<8x256xf32> to vector<8x240xf32>
    %cst_32 = arith.constant 0.000000e+00 : f32
    %76 = vector.broadcast %cst_32 : f32 to vector<8x16xf32>
    %77 = tpu.concatenate %75, %76 in 1 : vector<8x240xf32>, vector<8x16xf32> -> vector<8x256xf32>
    %c7 = arith.constant 7 : index
    %c0_33 = arith.constant 0 : index
    %c0_34 = arith.constant 0 : index
    %78 = vector.load %arg2[%c7, %c0_33, %c0_34] : memref<9x16x8xf32, #tpu.memory_space<vmem>>, vector<1x16x8xf32>
    %79 = vector.shape_cast %78 : vector<1x16x8xf32> to vector<16x8xf32>
    %cst_35 = arith.constant dense<0.000000e+00> : vector<16x256xf32>
    %80 = tpu.matmul %79, %77, %cst_35 {dimension_numbers = #tpu.dot_dimension_numbers<[1], [0], [0], [1], [0, 0, 1, 1], [], []>} : vector<16x8xf32>, vector<8x256xf32>, vector<16x256xf32> -> vector<16x256xf32>
    %81 = arith.addf %74, %80 : vector<16x256xf32>
    %82 = vector.extract_strided_slice %29 {offsets = [0, 17], sizes = [8, 239], strides = [1, 1]} : vector<8x256xf32> to vector<8x239xf32>
    %cst_36 = arith.constant 0.000000e+00 : f32
    %83 = vector.broadcast %cst_36 : f32 to vector<8x17xf32>
    %84 = tpu.concatenate %82, %83 in 1 : vector<8x239xf32>, vector<8x17xf32> -> vector<8x256xf32>
    %c8 = arith.constant 8 : index
    %c0_37 = arith.constant 0 : index
    %c0_38 = arith.constant 0 : index
    %85 = vector.load %arg2[%c8, %c0_37, %c0_38] : memref<9x16x8xf32, #tpu.memory_space<vmem>>, vector<1x16x8xf32>
    %86 = vector.shape_cast %85 : vector<1x16x8xf32> to vector<16x8xf32>
    %cst_39 = arith.constant dense<0.000000e+00> : vector<16x256xf32>
    %87 = tpu.matmul %86, %84, %cst_39 {dimension_numbers = #tpu.dot_dimension_numbers<[1], [0], [0], [1], [0, 0, 1, 1], [], []>} : vector<16x8xf32>, vector<8x256xf32>, vector<16x256xf32> -> vector<16x256xf32>
    %88 = arith.addf %81, %87 : vector<16x256xf32>
    %c0_40 = arith.constant 0 : index
    %c0_41 = arith.constant 0 : index
    %89 = vector.load %arg3[%c0_40, %c0_41] : memref<8x1xf32, #tpu.memory_space<vmem>>, vector<8x1xf32>
    %c0_42 = arith.constant 0 : index
    %c0_43 = arith.constant 0 : index
    %90 = vector.load %arg4[%c0_42, %c0_43] : memref<8x1xf32, #tpu.memory_space<vmem>>, vector<8x1xf32>
    %cst_44 = arith.constant dense<0.000000e+00> : vector<16xf32>
    %91 = vector.multi_reduction <add>, %88, %cst_44 [1] : vector<16x256xf32> to vector<16xf32>
    %92 = vector.shape_cast %91 : vector<16xf32> to vector<16x1xf32>
    %93 = arith.mulf %88, %88 : vector<16x256xf32>
    %cst_45 = arith.constant dense<0.000000e+00> : vector<16xf32>
    %94 = vector.multi_reduction <add>, %93, %cst_45 [1] : vector<16x256xf32> to vector<16xf32>
    %95 = vector.shape_cast %94 : vector<16xf32> to vector<16x1xf32>
    %96 = vector.extract_strided_slice %92 {offsets = [0, 0], sizes = [8, 1], strides = [1, 1]} : vector<16x1xf32> to vector<8x1xf32>
    %97 = vector.extract_strided_slice %95 {offsets = [0, 0], sizes = [8, 1], strides = [1, 1]} : vector<16x1xf32> to vector<8x1xf32>
    %98 = vector.extract_strided_slice %92 {offsets = [8, 0], sizes = [8, 1], strides = [1, 1]} : vector<16x1xf32> to vector<8x1xf32>
    %99 = arith.addf %96, %98 : vector<8x1xf32>
    %100 = vector.extract_strided_slice %95 {offsets = [8, 0], sizes = [8, 1], strides = [1, 1]} : vector<16x1xf32> to vector<8x1xf32>
    %101 = arith.addf %97, %100 : vector<8x1xf32>
    %cst_46 = arith.constant 0.001953125 : f32
    %102 = vector.broadcast %cst_46 : f32 to vector<8x1xf32>
    %103 = arith.mulf %99, %102 : vector<8x1xf32>
    %cst_47 = arith.constant 0.001953125 : f32
    %104 = vector.broadcast %cst_47 : f32 to vector<8x1xf32>
    %105 = arith.mulf %101, %104 : vector<8x1xf32>
    %106 = arith.mulf %103, %103 : vector<8x1xf32>
    %107 = arith.subf %105, %106 : vector<8x1xf32>
    %cst_48 = arith.constant 0.000000e+00 : f32
    %108 = vector.broadcast %cst_48 : f32 to vector<8x1xf32>
    %109 = arith.maximumf %107, %108 : vector<8x1xf32>
    %cst_49 = arith.constant 9.99999974E-6 : f32
    %110 = vector.broadcast %cst_49 : f32 to vector<8x1xf32>
    %111 = arith.addf %109, %110 : vector<8x1xf32>
    %112 = math.rsqrt %111 : vector<8x1xf32>
    %113 = arith.mulf %89, %112 : vector<8x1xf32>
    %114 = arith.mulf %103, %113 : vector<8x1xf32>
    %115 = arith.subf %90, %114 : vector<8x1xf32>
    %116 = tpu.concatenate %113, %113 in 0 : vector<8x1xf32>, vector<8x1xf32> -> vector<16x1xf32>
    %117 = tpu.concatenate %115, %115 in 0 : vector<8x1xf32>, vector<8x1xf32> -> vector<16x1xf32>
    %118 = vector.broadcast %116 : vector<16x1xf32> to vector<16x256xf32>
    %119 = arith.mulf %88, %118 : vector<16x256xf32>
    %120 = vector.broadcast %117 : vector<16x1xf32> to vector<16x256xf32>
    %121 = arith.addf %119, %120 : vector<16x256xf32>
    %cst_50 = arith.constant 0.000000e+00 : f32
    %122 = vector.broadcast %cst_50 : f32 to vector<16x256xf32>
    %123 = arith.maximumf %121, %122 : vector<16x256xf32>
    %124 = vector.broadcast %25 : vector<1x256xf32> to vector<16x256xf32>
    %125 = arith.mulf %123, %124 : vector<16x256xf32>
    %126 = vector.broadcast %21 : vector<1x256xf32> to vector<16x256xf32>
    %127 = arith.mulf %123, %126 : vector<16x256xf32>
    %cst_51 = arith.constant 0.000000e+00 : f32
    %128 = vector.broadcast %cst_51 : f32 to vector<16x17xf32>
    %129 = vector.extract_strided_slice %125 {offsets = [0, 0], sizes = [16, 239], strides = [1, 1]} : vector<16x256xf32> to vector<16x239xf32>
    %130 = tpu.concatenate %128, %129 in 1 : vector<16x17xf32>, vector<16x239xf32> -> vector<16x256xf32>
    %c0_52 = arith.constant 0 : index
    %c0_53 = arith.constant 0 : index
    %c0_54 = arith.constant 0 : index
    %131 = vector.load %arg5[%c0_52, %c0_53, %c0_54] : memref<9x8x16xf32, #tpu.memory_space<vmem>>, vector<1x8x16xf32>
    %132 = vector.shape_cast %131 : vector<1x8x16xf32> to vector<8x16xf32>
    %cst_55 = arith.constant dense<0.000000e+00> : vector<8x256xf32>
    %133 = tpu.matmul %132, %130, %cst_55 {dimension_numbers = #tpu.dot_dimension_numbers<[1], [0], [0], [1], [0, 0, 1, 1], [], []>} : vector<8x16xf32>, vector<16x256xf32>, vector<8x256xf32> -> vector<8x256xf32>
    %cst_56 = arith.constant 0.000000e+00 : f32
    %134 = vector.broadcast %cst_56 : f32 to vector<16x16xf32>
    %135 = vector.extract_strided_slice %123 {offsets = [0, 0], sizes = [16, 240], strides = [1, 1]} : vector<16x256xf32> to vector<16x240xf32>
    %136 = tpu.concatenate %134, %135 in 1 : vector<16x16xf32>, vector<16x240xf32> -> vector<16x256xf32>
    %c1_57 = arith.constant 1 : index
    %c0_58 = arith.constant 0 : index
    %c0_59 = arith.constant 0 : index
    %137 = vector.load %arg5[%c1_57, %c0_58, %c0_59] : memref<9x8x16xf32, #tpu.memory_space<vmem>>, vector<1x8x16xf32>
    %138 = vector.shape_cast %137 : vector<1x8x16xf32> to vector<8x16xf32>
    %cst_60 = arith.constant dense<0.000000e+00> : vector<8x256xf32>
    %139 = tpu.matmul %138, %136, %cst_60 {dimension_numbers = #tpu.dot_dimension_numbers<[1], [0], [0], [1], [0, 0, 1, 1], [], []>} : vector<8x16xf32>, vector<16x256xf32>, vector<8x256xf32> -> vector<8x256xf32>
    %140 = arith.addf %133, %139 : vector<8x256xf32>
    %cst_61 = arith.constant 0.000000e+00 : f32
    %141 = vector.broadcast %cst_61 : f32 to vector<16x15xf32>
    %142 = vector.extract_strided_slice %127 {offsets = [0, 0], sizes = [16, 241], strides = [1, 1]} : vector<16x256xf32> to vector<16x241xf32>
    %143 = tpu.concatenate %141, %142 in 1 : vector<16x15xf32>, vector<16x241xf32> -> vector<16x256xf32>
    %c2_62 = arith.constant 2 : index
    %c0_63 = arith.constant 0 : index
    %c0_64 = arith.constant 0 : index
    %144 = vector.load %arg5[%c2_62, %c0_63, %c0_64] : memref<9x8x16xf32, #tpu.memory_space<vmem>>, vector<1x8x16xf32>
    %145 = vector.shape_cast %144 : vector<1x8x16xf32> to vector<8x16xf32>
    %cst_65 = arith.constant dense<0.000000e+00> : vector<8x256xf32>
    %146 = tpu.matmul %145, %143, %cst_65 {dimension_numbers = #tpu.dot_dimension_numbers<[1], [0], [0], [1], [0, 0, 1, 1], [], []>} : vector<8x16xf32>, vector<16x256xf32>, vector<8x256xf32> -> vector<8x256xf32>
    %147 = arith.addf %140, %146 : vector<8x256xf32>
    %cst_66 = arith.constant 0.000000e+00 : f32
    %148 = vector.broadcast %cst_66 : f32 to vector<16x1xf32>
    %149 = vector.extract_strided_slice %125 {offsets = [0, 0], sizes = [16, 255], strides = [1, 1]} : vector<16x256xf32> to vector<16x255xf32>
    %150 = tpu.concatenate %148, %149 in 1 : vector<16x1xf32>, vector<16x255xf32> -> vector<16x256xf32>
    %c3_67 = arith.constant 3 : index
    %c0_68 = arith.constant 0 : index
    %c0_69 = arith.constant 0 : index
    %151 = vector.load %arg5[%c3_67, %c0_68, %c0_69] : memref<9x8x16xf32, #tpu.memory_space<vmem>>, vector<1x8x16xf32>
    %152 = vector.shape_cast %151 : vector<1x8x16xf32> to vector<8x16xf32>
    %cst_70 = arith.constant dense<0.000000e+00> : vector<8x256xf32>
    %153 = tpu.matmul %152, %150, %cst_70 {dimension_numbers = #tpu.dot_dimension_numbers<[1], [0], [0], [1], [0, 0, 1, 1], [], []>} : vector<8x16xf32>, vector<16x256xf32>, vector<8x256xf32> -> vector<8x256xf32>
    %154 = arith.addf %147, %153 : vector<8x256xf32>
    %c4_71 = arith.constant 4 : index
    %c0_72 = arith.constant 0 : index
    %c0_73 = arith.constant 0 : index
    %155 = vector.load %arg5[%c4_71, %c0_72, %c0_73] : memref<9x8x16xf32, #tpu.memory_space<vmem>>, vector<1x8x16xf32>
    %156 = vector.shape_cast %155 : vector<1x8x16xf32> to vector<8x16xf32>
    %cst_74 = arith.constant dense<0.000000e+00> : vector<8x256xf32>
    %157 = tpu.matmul %156, %123, %cst_74 {dimension_numbers = #tpu.dot_dimension_numbers<[1], [0], [0], [1], [0, 0, 1, 1], [], []>} : vector<8x16xf32>, vector<16x256xf32>, vector<8x256xf32> -> vector<8x256xf32>
    %158 = arith.addf %154, %157 : vector<8x256xf32>
    %159 = vector.extract_strided_slice %127 {offsets = [0, 1], sizes = [16, 255], strides = [1, 1]} : vector<16x256xf32> to vector<16x255xf32>
    %cst_75 = arith.constant 0.000000e+00 : f32
    %160 = vector.broadcast %cst_75 : f32 to vector<16x1xf32>
    %161 = tpu.concatenate %159, %160 in 1 : vector<16x255xf32>, vector<16x1xf32> -> vector<16x256xf32>
    %c5_76 = arith.constant 5 : index
    %c0_77 = arith.constant 0 : index
    %c0_78 = arith.constant 0 : index
    %162 = vector.load %arg5[%c5_76, %c0_77, %c0_78] : memref<9x8x16xf32, #tpu.memory_space<vmem>>, vector<1x8x16xf32>
    %163 = vector.shape_cast %162 : vector<1x8x16xf32> to vector<8x16xf32>
    %cst_79 = arith.constant dense<0.000000e+00> : vector<8x256xf32>
    %164 = tpu.matmul %163, %161, %cst_79 {dimension_numbers = #tpu.dot_dimension_numbers<[1], [0], [0], [1], [0, 0, 1, 1], [], []>} : vector<8x16xf32>, vector<16x256xf32>, vector<8x256xf32> -> vector<8x256xf32>
    %165 = arith.addf %158, %164 : vector<8x256xf32>
    %166 = vector.extract_strided_slice %125 {offsets = [0, 15], sizes = [16, 241], strides = [1, 1]} : vector<16x256xf32> to vector<16x241xf32>
    %cst_80 = arith.constant 0.000000e+00 : f32
    %167 = vector.broadcast %cst_80 : f32 to vector<16x15xf32>
    %168 = tpu.concatenate %166, %167 in 1 : vector<16x241xf32>, vector<16x15xf32> -> vector<16x256xf32>
    %c6_81 = arith.constant 6 : index
    %c0_82 = arith.constant 0 : index
    %c0_83 = arith.constant 0 : index
    %169 = vector.load %arg5[%c6_81, %c0_82, %c0_83] : memref<9x8x16xf32, #tpu.memory_space<vmem>>, vector<1x8x16xf32>
    %170 = vector.shape_cast %169 : vector<1x8x16xf32> to vector<8x16xf32>
    %cst_84 = arith.constant dense<0.000000e+00> : vector<8x256xf32>
    %171 = tpu.matmul %170, %168, %cst_84 {dimension_numbers = #tpu.dot_dimension_numbers<[1], [0], [0], [1], [0, 0, 1, 1], [], []>} : vector<8x16xf32>, vector<16x256xf32>, vector<8x256xf32> -> vector<8x256xf32>
    %172 = arith.addf %165, %171 : vector<8x256xf32>
    %173 = vector.extract_strided_slice %123 {offsets = [0, 16], sizes = [16, 240], strides = [1, 1]} : vector<16x256xf32> to vector<16x240xf32>
    %cst_85 = arith.constant 0.000000e+00 : f32
    %174 = vector.broadcast %cst_85 : f32 to vector<16x16xf32>
    %175 = tpu.concatenate %173, %174 in 1 : vector<16x240xf32>, vector<16x16xf32> -> vector<16x256xf32>
    %c7_86 = arith.constant 7 : index
    %c0_87 = arith.constant 0 : index
    %c0_88 = arith.constant 0 : index
    %176 = vector.load %arg5[%c7_86, %c0_87, %c0_88] : memref<9x8x16xf32, #tpu.memory_space<vmem>>, vector<1x8x16xf32>
    %177 = vector.shape_cast %176 : vector<1x8x16xf32> to vector<8x16xf32>
    %cst_89 = arith.constant dense<0.000000e+00> : vector<8x256xf32>
    %178 = tpu.matmul %177, %175, %cst_89 {dimension_numbers = #tpu.dot_dimension_numbers<[1], [0], [0], [1], [0, 0, 1, 1], [], []>} : vector<8x16xf32>, vector<16x256xf32>, vector<8x256xf32> -> vector<8x256xf32>
    %179 = arith.addf %172, %178 : vector<8x256xf32>
    %180 = vector.extract_strided_slice %127 {offsets = [0, 17], sizes = [16, 239], strides = [1, 1]} : vector<16x256xf32> to vector<16x239xf32>
    %cst_90 = arith.constant 0.000000e+00 : f32
    %181 = vector.broadcast %cst_90 : f32 to vector<16x17xf32>
    %182 = tpu.concatenate %180, %181 in 1 : vector<16x239xf32>, vector<16x17xf32> -> vector<16x256xf32>
    %c8_91 = arith.constant 8 : index
    %c0_92 = arith.constant 0 : index
    %c0_93 = arith.constant 0 : index
    %183 = vector.load %arg5[%c8_91, %c0_92, %c0_93] : memref<9x8x16xf32, #tpu.memory_space<vmem>>, vector<1x8x16xf32>
    %184 = vector.shape_cast %183 : vector<1x8x16xf32> to vector<8x16xf32>
    %cst_94 = arith.constant dense<0.000000e+00> : vector<8x256xf32>
    %185 = tpu.matmul %184, %182, %cst_94 {dimension_numbers = #tpu.dot_dimension_numbers<[1], [0], [0], [1], [0, 0, 1, 1], [], []>} : vector<8x16xf32>, vector<16x256xf32>, vector<8x256xf32> -> vector<8x256xf32>
    %186 = arith.addf %179, %185 : vector<8x256xf32>
    %c0_95 = arith.constant 0 : index
    %c0_96 = arith.constant 0 : index
    %187 = vector.load %arg6[%c0_95, %c0_96] : memref<4x1xf32, #tpu.memory_space<vmem>>, vector<4x1xf32>
    %c0_97 = arith.constant 0 : index
    %c0_98 = arith.constant 0 : index
    %188 = vector.load %arg7[%c0_97, %c0_98] : memref<4x1xf32, #tpu.memory_space<vmem>>, vector<4x1xf32>
    %cst_99 = arith.constant dense<0.000000e+00> : vector<8xf32>
    %189 = vector.multi_reduction <add>, %186, %cst_99 [1] : vector<8x256xf32> to vector<8xf32>
    %190 = vector.shape_cast %189 : vector<8xf32> to vector<8x1xf32>
    %191 = arith.mulf %186, %186 : vector<8x256xf32>
    %cst_100 = arith.constant dense<0.000000e+00> : vector<8xf32>
    %192 = vector.multi_reduction <add>, %191, %cst_100 [1] : vector<8x256xf32> to vector<8xf32>
    %193 = vector.shape_cast %192 : vector<8xf32> to vector<8x1xf32>
    %194 = vector.extract_strided_slice %190 {offsets = [0, 0], sizes = [4, 1], strides = [1, 1]} : vector<8x1xf32> to vector<4x1xf32>
    %195 = vector.extract_strided_slice %193 {offsets = [0, 0], sizes = [4, 1], strides = [1, 1]} : vector<8x1xf32> to vector<4x1xf32>
    %196 = vector.extract_strided_slice %190 {offsets = [4, 0], sizes = [4, 1], strides = [1, 1]} : vector<8x1xf32> to vector<4x1xf32>
    %197 = arith.addf %194, %196 : vector<4x1xf32>
    %198 = vector.extract_strided_slice %193 {offsets = [4, 0], sizes = [4, 1], strides = [1, 1]} : vector<8x1xf32> to vector<4x1xf32>
    %199 = arith.addf %195, %198 : vector<4x1xf32>
    %cst_101 = arith.constant 0.001953125 : f32
    %200 = vector.broadcast %cst_101 : f32 to vector<4x1xf32>
    %201 = arith.mulf %197, %200 : vector<4x1xf32>
    %cst_102 = arith.constant 0.001953125 : f32
    %202 = vector.broadcast %cst_102 : f32 to vector<4x1xf32>
    %203 = arith.mulf %199, %202 : vector<4x1xf32>
    %204 = arith.mulf %201, %201 : vector<4x1xf32>
    %205 = arith.subf %203, %204 : vector<4x1xf32>
    %cst_103 = arith.constant 0.000000e+00 : f32
    %206 = vector.broadcast %cst_103 : f32 to vector<4x1xf32>
    %207 = arith.maximumf %205, %206 : vector<4x1xf32>
    %cst_104 = arith.constant 9.99999974E-6 : f32
    %208 = vector.broadcast %cst_104 : f32 to vector<4x1xf32>
    %209 = arith.addf %207, %208 : vector<4x1xf32>
    %210 = math.rsqrt %209 : vector<4x1xf32>
    %211 = arith.mulf %187, %210 : vector<4x1xf32>
    %212 = arith.mulf %201, %211 : vector<4x1xf32>
    %213 = arith.subf %188, %212 : vector<4x1xf32>
    %214 = tpu.concatenate %211, %211 in 0 : vector<4x1xf32>, vector<4x1xf32> -> vector<8x1xf32>
    %215 = tpu.concatenate %213, %213 in 0 : vector<4x1xf32>, vector<4x1xf32> -> vector<8x1xf32>
    %216 = vector.broadcast %214 : vector<8x1xf32> to vector<8x256xf32>
    %217 = arith.mulf %186, %216 : vector<8x256xf32>
    %218 = vector.broadcast %215 : vector<8x1xf32> to vector<8x256xf32>
    %219 = arith.addf %217, %218 : vector<8x256xf32>
    %220 = arith.addf %219, %0 : vector<8x256xf32>
    %cst_105 = arith.constant 0.000000e+00 : f32
    %221 = vector.broadcast %cst_105 : f32 to vector<8x256xf32>
    %222 = arith.maximumf %220, %221 : vector<8x256xf32>
    %c0_106 = arith.constant 0 : index
    %c0_107 = arith.constant 0 : index
    %223 = vector.load %arg8[%c0_106, %c0_107] : memref<8x256xf32, #tpu.memory_space<vmem>>, vector<8x256xf32>
    tpu.vector_store %arg8[%c0_106, %c0_107], %222 {strides = array<i32>} : memref<8x256xf32, #tpu.memory_space<vmem>>, vector<8x256xf32>,
    return
  }
  func.func @transform_0(%arg0: i32) -> (i32, i32) {
    %c0_i32 = arith.constant 0 : i32
    %c0_i32_0 = arith.constant 0 : i32
    %c0_i32_1 = arith.constant 0 : i32
    return %c0_i32, %c0_i32_0 : i32, i32
  }
  func.func @transform_1(%arg0: i32) -> (i32, i32, i32) {
    %c0_i32 = arith.constant 0 : i32
    %c0_i32_0 = arith.constant 0 : i32
    %c0_i32_1 = arith.constant 0 : i32
    %c0_i32_2 = arith.constant 0 : i32
    return %c0_i32, %c0_i32_0, %c0_i32_1 : i32, i32, i32
  }
  func.func @transform_2(%arg0: i32) -> (i32, i32) {
    %c0_i32 = arith.constant 0 : i32
    %c0_i32_0 = arith.constant 0 : i32
    %c0_i32_1 = arith.constant 0 : i32
    return %c0_i32, %c0_i32_0 : i32, i32
  }
  func.func @transform_3(%arg0: i32) -> (i32, i32) {
    %c0_i32 = arith.constant 0 : i32
    %c0_i32_0 = arith.constant 0 : i32
    %c0_i32_1 = arith.constant 0 : i32
    return %c0_i32, %c0_i32_0 : i32, i32
  }
  func.func @transform_4(%arg0: i32) -> (i32, i32, i32) {
    %c0_i32 = arith.constant 0 : i32
    %c0_i32_0 = arith.constant 0 : i32
    %c0_i32_1 = arith.constant 0 : i32
    %c0_i32_2 = arith.constant 0 : i32
    return %c0_i32, %c0_i32_0, %c0_i32_1 : i32, i32, i32
  }
  func.func @transform_5(%arg0: i32) -> (i32, i32) {
    %c0_i32 = arith.constant 0 : i32
    %c0_i32_0 = arith.constant 0 : i32
    %c0_i32_1 = arith.constant 0 : i32
    return %c0_i32, %c0_i32_0 : i32, i32
  }
  func.func @transform_6(%arg0: i32) -> (i32, i32) {
    %c0_i32 = arith.constant 0 : i32
    %c0_i32_0 = arith.constant 0 : i32
    %c0_i32_1 = arith.constant 0 : i32
    return %c0_i32, %c0_i32_0 : i32, i32
  }
  func.func @transform_7(%arg0: i32) -> (i32, i32) {
    %c0_i32 = arith.constant 0 : i32
    %c0_i32_0 = arith.constant 0 : i32
    %c0_i32_1 = arith.constant 0 : i32
    return %c0_i32, %c0_i32_0 : i32, i32
  }
}

</mosaic_0001>

<llo_original>
// kernel: tpu_custom_call.1
$region0: #{tpu_custom_call.1}
  #allocation0 [shape = 'u32[]', space=smem, size = 0x4, offset = 0x4, fixed_abs, tag = 'smem constant byte address 0x4 - core index']
  #allocation1 [shape = 'u32[72,128]{1,0:T(1,128)}', space=vmem, size = 0x9000, scoped, tag = 'internal scratch']
  %s0 = inlined_call_operand.vmem [shape: f32[8,256], index: 0, kind: input, shape index: {}]
  %s1 = inlined_call_operand.vmem [shape: f32[9,16,8], index: 1, kind: input, shape index: {}]
  %s2 = inlined_call_operand.vmem [shape: f32[8,1], index: 2, kind: input, shape index: {}]
  %s3 = inlined_call_operand.vmem [shape: f32[8,1], index: 3, kind: input, shape index: {}]
  %s4 = inlined_call_operand.vmem [shape: f32[9,8,16], index: 4, kind: input, shape index: {}]
  %s5 = inlined_call_operand.vmem [shape: f32[4,1], index: 5, kind: input, shape index: {}]
  %s6 = inlined_call_operand.vmem [shape: f32[4,1], index: 6, kind: input, shape index: {}]
  %s7 = inlined_call_operand.hbm [shape: f32[8,256], index: 7, kind: output, shape index: {}]
  %s8 = sld [smem:[#allocation0]]
  $region38: #{tpu_custom_call.1} parent=0
    _
  %s10 = ssub.s32 1, %s8
  %s11 = scalar_select 0, %s10, %s8
  $region1: #{tpu_custom_call.1} parent=0
    #allocation2 [shape = 'u8[8192]{0}', space=vmem, size = 0x2000, scoped, tag = 'output window, operand 0, single buffered']
    #allocation3 [shape = 's32[1]{0}', space=sflag, size = 0x4, scoped, tag = 'scoped memory for tpu_custom_call.1']
    %12 = vsyncpa [#allocation3], 0
    // Predicated region
    $region2: #{tpu_custom_call.1} parent=1 // pred_check
      _
    $region3: #{tpu_custom_call.1} parent=1 // pred_check_branch
      %14 = sbr.rel (0) target = $region5
    $region4: #{tpu_custom_call.1} parent=1 // pred_region
      _
    $region5: #{tpu_custom_call.1} parent=1 // pred_fallthru
      _
    // Predicated region
    $region6: #{tpu_custom_call.1} parent=1 // pred_check
      _
    $region7: #{tpu_custom_call.1} parent=1 // pred_check_branch
      %16 = sbr.rel (0) target = $region9
    $region8: #{tpu_custom_call.1} parent=1 // pred_region
      _
    $region9: #{tpu_custom_call.1} parent=1 // pred_fallthru
      _
    // Predicated region
    $region10: #{tpu_custom_call.1} parent=1 // pred_check
      _
    $region11: #{tpu_custom_call.1} parent=1 // pred_check_branch
      %18 = sbr.rel (0) target = $region13
    $region12: #{tpu_custom_call.1} parent=1 // pred_region
      _
    $region13: #{tpu_custom_call.1} parent=1 // pred_fallthru
      _
    // Predicated region
    $region14: #{tpu_custom_call.1} parent=1 // pred_check
      _
    $region15: #{tpu_custom_call.1} parent=1 // pred_check_branch
      %20 = sbr.rel (0) target = $region17
    $region16: #{tpu_custom_call.1} parent=1 // pred_region
      _
    $region17: #{tpu_custom_call.1} parent=1 // pred_fallthru
      _
    // Predicated region
    $region18: #{tpu_custom_call.1} parent=1 // pred_check
      _
    $region19: #{tpu_custom_call.1} parent=1 // pred_check_branch
      %22 = sbr.rel (0) target = $region21
    $region20: #{tpu_custom_call.1} parent=1 // pred_region
      _
    $region21: #{tpu_custom_call.1} parent=1 // pred_fallthru
      _
    // Predicated region
    $region22: #{tpu_custom_call.1} parent=1 // pred_check
      _
    $region23: #{tpu_custom_call.1} parent=1 // pred_check_branch
      %24 = sbr.rel (0) target = $region25
    $region24: #{tpu_custom_call.1} parent=1 // pred_region
      _
    $region25: #{tpu_custom_call.1} parent=1 // pred_fallthru
      _
    // Predicated region
    $region26: #{tpu_custom_call.1} parent=1 // pred_check
      _
    $region27: #{tpu_custom_call.1} parent=1 // pred_check_branch
      %26 = sbr.rel (0) target = $region29
    $region28: #{tpu_custom_call.1} parent=1 // pred_region
      _
    $region29: #{tpu_custom_call.1} parent=1 // pred_fallthru
      _
    %v27 = vld [vmem:[%s0] sm:$0xff]
    %v28 = vld [vmem:[%s0 + $0x8] sm:$0xff]
    %v29 = vlaneseq
    %v30 = vand.u32 %v29, 127
    %v31 = vadd.s32 %v30, 128
    %vm32 = vcmp.lt.s32.totalorder %v30, 0
    %v33 = vsub.s32 0, %v30
    %v34 = vsel %vm32, %v33, %v30
    %v35 = vshrl.u32 %v34, 4
    %v36 = vand.u32 %v34, 15
    %v37 = vsub.s32 0, %v36
    %v38 = vsel %vm32, %v37, %v36
    %vm39 = vcmp.lt.s32.totalorder %v31, 0
    %v40 = vsub.s32 0, %v31
    %v41 = vsel %vm39, %v40, %v31
    %v42 = vshrl.u32 %v41, 4
    %v43 = vand.u32 %v41, 15
    %v44 = vsub.s32 0, %v43
    %v45 = vsel %vm39, %v44, %v43
    %vm46 = vcmp.ne.s32.totalorder %v38, 0
    %vm47 = vcmp.ne.s32.totalorder %v45, 0
    %vm48 = vcmp.lt.s32.totalorder %v38, 0
    %vm49 = vcmp.lt.s32.totalorder %v45, 0
    %vm50 = vmand %vm48, %vm46
    %vm51 = vmand %vm49, %vm47
    %v52 = vadd.s32 %v38, 16
    %v53 = vadd.s32 %v45, 16
    %v54 = vsel %vm50, %v52, %v38
    %v55 = vsel %vm51, %v53, %v45
    %vm56 = vcmp.ne.s32.totalorder %v54, 0
    %vm57 = vcmp.ne.s32.totalorder %v55, 0
    %v58 = vsel %vm56, 1, 0
    %v59 = vsel %vm57, 1, 0
    %v60 = vcvt.s32.f32 %v58
    %v61 = vcvt.s32.f32 %v59
    %vm62 = vcmp.ne.s32.totalorder %v54, 15
    %vm63 = vcmp.ne.s32.totalorder %v55, 15
    %v64 = vsel %vm62, 1, 0
    %v65 = vsel %vm63, 1, 0
    %v66 = vcvt.s32.f32 %v64
    %v67 = vcvt.s32.f32 %v65
    %v68 = vmul.f32 %v27, %v66
    %v69 = vmul.f32 %v28, %v67
    %v70 = vmul.f32 %v27, %v60
    %v71 = vmul.f32 %v28, %v61
    %74 = vrot.lane.b32.xlu0 %v68, 17
    %v75 = vpop.permute.xlu0 %74
    %76 = vrot.lane.b32.xlu0 %v69, 17
    %v77 = vpop.permute.xlu0 %76
    %vm78 = vcmask 138240
    %v79 = vsel %vm78, %v75, %v77
    %v82 = vsel %vm78, 0.0, %v75
    %v83 = vld [vmem:[%s1] sm:$0xff]
    %v84 = vld [vmem:[%s1 + $0x8] sm:$0xff]
    %87 = vrot.lane.b32.xlu0 %v27, 16
    %v88 = vpop.permute.xlu0 %87
    %89 = vrot.lane.b32.xlu0 %v28, 16
    %v90 = vpop.permute.xlu0 %89
    %vm91 = vcmask 130048
    %v92 = vsel %vm91, %v88, %v90
    %v95 = vsel %vm91, 0.0, %v88
    %s96 = scalar_lea.vmem %s1, 16
    %v97 = vld [vmem:[%s96] sm:$0xff]
    %v98 = vld [vmem:[%s96 + $0x8] sm:$0xff]
    %vm99 = vcmask 64512
    %v101 = vsel %vm99, %v97, 0
    %v104 = vsel %vm99, %v98, 0
    %106 = vmatpush.msra.mxu0 0.0
    %107 = vmatpush.msra.mxu0 0.0
    %108 = vmatpush.msra.mxu0 0.0
    %109 = vmatpush.msra.mxu0 0.0
    %110 = vmatpush.msra.mxu0 0.0
    %111 = vmatpush.msra.mxu0 0.0
    %112 = vmatpush.msra.mxu0 0.0
    %113 = vmatpush.msra.mxu0 0.0
    %114 = vmatpush.msra.mxu0 0.0
    %115 = vmatpush.msra.mxu0 0.0
    %116 = vmatpush.msra.mxu0 0.0
    %117 = vmatpush.msra.mxu0 0.0
    %118 = vmatpush.msra.mxu0 0.0
    %119 = vmatpush.msra.mxu0 0.0
    %120 = vmatpush.msra.mxu0 0.0
    %121 = vmatpush.msra.mxu0 %v95
    %122 = vmatmul.f32.gmra.mxu0 %v101
    %v123 = vpop.f32.mrf.mxu0
    %v124 = vadd.f32 0.0, %v123
    %125 = vmatmul.f32.gmra.mxu0 %v104
    %v126 = vpop.f32.mrf.mxu0
    %v127 = vadd.f32 0.0, %v126
    %128 = vdwg.mxu0
    %129 = vmatpush.msra.mxu0 0.0
    %130 = vmatpush.msra.mxu0 0.0
    %131 = vmatpush.msra.mxu0 0.0
    %132 = vmatpush.msra.mxu0 0.0
    %133 = vmatpush.msra.mxu0 0.0
    %134 = vmatpush.msra.mxu0 0.0
    %135 = vmatpush.msra.mxu0 0.0
    %136 = vmatpush.msra.mxu0 0.0
    %137 = vmatpush.msra.mxu0 0.0
    %138 = vmatpush.msra.mxu0 0.0
    %139 = vmatpush.msra.mxu0 0.0
    %140 = vmatpush.msra.mxu0 0.0
    %141 = vmatpush.msra.mxu0 0.0
    %142 = vmatpush.msra.mxu0 0.0
    %143 = vmatpush.msra.mxu0 0.0
    %144 = vmatpush.msra.mxu0 %v92
    %145 = vmatmul.f32.gmra.mxu0 %v101
    %v146 = vpop.f32.mrf.mxu0
    %v147 = vadd.f32 0.0, %v146
    %148 = vmatmul.f32.gmra.mxu0 %v104
    %v149 = vpop.f32.mrf.mxu0
    %v150 = vadd.f32 0.0, %v149
    %151 = vdwg.mxu0
    %v153 = vsel %vm99, %v83, 0
    %v156 = vsel %vm99, %v84, 0
    %158 = vmatpush.msra.mxu0 0.0
    %159 = vmatpush.msra.mxu0 0.0
    %160 = vmatpush.msra.mxu0 0.0
    %161 = vmatpush.msra.mxu0 0.0
    %162 = vmatpush.msra.mxu0 0.0
    %163 = vmatpush.msra.mxu0 0.0
    %164 = vmatpush.msra.mxu0 0.0
    %165 = vmatpush.msra.mxu0 0.0
    %166 = vmatpush.msra.mxu0 0.0
    %167 = vmatpush.msra.mxu0 0.0
    %168 = vmatpush.msra.mxu0 0.0
    %169 = vmatpush.msra.mxu0 0.0
    %170 = vmatpush.msra.mxu0 0.0
    %171 = vmatpush.msra.mxu0 0.0
    %172 = vmatpush.msra.mxu0 0.0
    %173 = vmatpush.msra.mxu0 %v82
    %174 = vmatmul.f32.gmra.mxu0 %v153
    %v175 = vpop.f32.mrf.mxu0
    %v176 = vadd.f32 %v124, %v175
    %177 = vmatmul.f32.gmra.mxu0 %v156
    %v178 = vpop.f32.mrf.mxu0
    %v179 = vadd.f32 %v127, %v178
    %180 = vdwg.mxu0
    %181 = vmatpush.msra.mxu0 0.0
    %182 = vmatpush.msra.mxu0 0.0
    %183 = vmatpush.msra.mxu0 0.0
    %184 = vmatpush.msra.mxu0 0.0
    %185 = vmatpush.msra.mxu0 0.0
    %186 = vmatpush.msra.mxu0 0.0
    %187 = vmatpush.msra.mxu0 0.0
    %188 = vmatpush.msra.mxu0 0.0
    %189 = vmatpush.msra.mxu0 0.0
    %190 = vmatpush.msra.mxu0 0.0
    %191 = vmatpush.msra.mxu0 0.0
    %192 = vmatpush.msra.mxu0 0.0
    %193 = vmatpush.msra.mxu0 0.0
    %194 = vmatpush.msra.mxu0 0.0
    %195 = vmatpush.msra.mxu0 0.0
    %196 = vmatpush.msra.mxu0 %v79
    %197 = vmatmul.f32.gmra.mxu0 %v153
    %v198 = vpop.f32.mrf.mxu0
    %v199 = vadd.f32 %v147, %v198
    %200 = vmatmul.f32.gmra.mxu0 %v156
    %v201 = vpop.f32.mrf.mxu0
    %v202 = vadd.f32 %v150, %v201
    %203 = vdwg.mxu0
    %206 = vrot.lane.b32.xlu0 %v70, 15
    %v207 = vpop.permute.xlu0 %206
    %208 = vrot.lane.b32.xlu0 %v71, 15
    %v209 = vpop.permute.xlu0 %208
    %vm210 = vcmask 121856
    %v211 = vsel %vm210, %v207, %v209
    %v214 = vsel %vm210, 0.0, %v207
    %s215 = scalar_lea.vmem %s1, 32
    %v216 = vld [vmem:[%s215] sm:$0xff]
    %v217 = vld [vmem:[%s215 + $0x8] sm:$0xff]
    %v219 = vsel %vm99, %v216, 0
    %v222 = vsel %vm99, %v217, 0
    %224 = vmatpush.msra.mxu0 0.0
    %225 = vmatpush.msra.mxu0 0.0
    %226 = vmatpush.msra.mxu0 0.0
    %227 = vmatpush.msra.mxu0 0.0
    %228 = vmatpush.msra.mxu0 0.0
    %229 = vmatpush.msra.mxu0 0.0
    %230 = vmatpush.msra.mxu0 0.0
    %231 = vmatpush.msra.mxu0 0.0
    %232 = vmatpush.msra.mxu0 0.0
    %233 = vmatpush.msra.mxu0 0.0
    %234 = vmatpush.msra.mxu0 0.0
    %235 = vmatpush.msra.mxu0 0.0
    %236 = vmatpush.msra.mxu0 0.0
    %237 = vmatpush.msra.mxu0 0.0
    %238 = vmatpush.msra.mxu0 0.0
    %239 = vmatpush.msra.mxu0 %v214
    %240 = vmatmul.f32.gmra.mxu0 %v219
    %v241 = vpop.f32.mrf.mxu0
    %v242 = vadd.f32 0.0, %v241
    %243 = vmatmul.f32.gmra.mxu0 %v222
    %v244 = vpop.f32.mrf.mxu0
    %v245 = vadd.f32 0.0, %v244
    %246 = vdwg.mxu0
    %247 = vmatpush.msra.mxu0 0.0
    %248 = vmatpush.msra.mxu0 0.0
    %249 = vmatpush.msra.mxu0 0.0
    %250 = vmatpush.msra.mxu0 0.0
    %251 = vmatpush.msra.mxu0 0.0
    %252 = vmatpush.msra.mxu0 0.0
    %253 = vmatpush.msra.mxu0 0.0
    %254 = vmatpush.msra.mxu0 0.0
    %255 = vmatpush.msra.mxu0 0.0
    %256 = vmatpush.msra.mxu0 0.0
    %257 = vmatpush.msra.mxu0 0.0
    %258 = vmatpush.msra.mxu0 0.0
    %259 = vmatpush.msra.mxu0 0.0
    %260 = vmatpush.msra.mxu0 0.0
    %261 = vmatpush.msra.mxu0 0.0
    %262 = vmatpush.msra.mxu0 %v211
    %263 = vmatmul.f32.gmra.mxu0 %v219
    %v264 = vpop.f32.mrf.mxu0
    %v265 = vadd.f32 0.0, %v264
    %266 = vmatmul.f32.gmra.mxu0 %v222
    %v267 = vpop.f32.mrf.mxu0
    %v268 = vadd.f32 0.0, %v267
    %269 = vdwg.mxu0
    %v270 = vadd.f32 %v176, %v242
    %v271 = vadd.f32 %v199, %v265
    %v272 = vadd.f32 %v179, %v245
    %v273 = vadd.f32 %v202, %v268
    %274 = vrot.lane.b32.xlu0 %v68, 1
    %v275 = vpop.permute.xlu0 %274
    %276 = vrot.lane.b32.xlu0 %v69, 1
    %v277 = vpop.permute.xlu0 %276
    %vm278 = vcmask 7168
    %v279 = vsel %vm278, %v275, %v277
    %v282 = vsel %vm278, 0.0, %v275
    %s283 = scalar_lea.vmem %s1, 48
    %v284 = vld [vmem:[%s283] sm:$0xff]
    %v285 = vld [vmem:[%s283 + $0x8] sm:$0xff]
    %v287 = vsel %vm99, %v284, 0
    %v290 = vsel %vm99, %v285, 0
    %292 = vmatpush.msra.mxu0 0.0
    %293 = vmatpush.msra.mxu0 0.0
    %294 = vmatpush.msra.mxu0 0.0
    %295 = vmatpush.msra.mxu0 0.0
    %296 = vmatpush.msra.mxu0 0.0
    %297 = vmatpush.msra.mxu0 0.0
    %298 = vmatpush.msra.mxu0 0.0
    %299 = vmatpush.msra.mxu0 0.0
    %300 = vmatpush.msra.mxu0 0.0
    %301 = vmatpush.msra.mxu0 0.0
    %302 = vmatpush.msra.mxu0 0.0
    %303 = vmatpush.msra.mxu0 0.0
    %304 = vmatpush.msra.mxu0 0.0
    %305 = vmatpush.msra.mxu0 0.0
    %306 = vmatpush.msra.mxu0 0.0
    %307 = vmatpush.msra.mxu0 %v282
    %308 = vmatmul.f32.gmra.mxu0 %v287
    %v309 = vpop.f32.mrf.mxu0
    %v310 = vadd.f32 0.0, %v309
    %311 = vmatmul.f32.gmra.mxu0 %v290
    %v312 = vpop.f32.mrf.mxu0
    %v313 = vadd.f32 0.0, %v312
    %314 = vdwg.mxu0
    %315 = vmatpush.msra.mxu0 0.0
    %316 = vmatpush.msra.mxu0 0.0
    %317 = vmatpush.msra.mxu0 0.0
    %318 = vmatpush.msra.mxu0 0.0
    %319 = vmatpush.msra.mxu0 0.0
    %320 = vmatpush.msra.mxu0 0.0
    %321 = vmatpush.msra.mxu0 0.0
    %322 = vmatpush.msra.mxu0 0.0
    %323 = vmatpush.msra.mxu0 0.0
    %324 = vmatpush.msra.mxu0 0.0
    %325 = vmatpush.msra.mxu0 0.0
    %326 = vmatpush.msra.mxu0 0.0
    %327 = vmatpush.msra.mxu0 0.0
    %328 = vmatpush.msra.mxu0 0.0
    %329 = vmatpush.msra.mxu0 0.0
    %330 = vmatpush.msra.mxu0 %v279
    %331 = vmatmul.f32.gmra.mxu0 %v287
    %v332 = vpop.f32.mrf.mxu0
    %v333 = vadd.f32 0.0, %v332
    %334 = vmatmul.f32.gmra.mxu0 %v290
    %v335 = vpop.f32.mrf.mxu0
    %v336 = vadd.f32 0.0, %v335
    %337 = vdwg.mxu0
    %v338 = vadd.f32 %v270, %v310
    %v339 = vadd.f32 %v271, %v333
    %v340 = vadd.f32 %v272, %v313
    %v341 = vadd.f32 %v273, %v336
    %s342 = scalar_lea.vmem %s1, 64
    %v343 = vld [vmem:[%s342] sm:$0xff]
    %v344 = vld [vmem:[%s342 + $0x8] sm:$0xff]
    %v346 = vsel %vm99, %v343, 0
    %v349 = vsel %vm99, %v344, 0
    %351 = vmatpush.msra.mxu0 0.0
    %352 = vmatpush.msra.mxu0 0.0
    %353 = vmatpush.msra.mxu0 0.0
    %354 = vmatpush.msra.mxu0 0.0
    %355 = vmatpush.msra.mxu0 0.0
    %356 = vmatpush.msra.mxu0 0.0
    %357 = vmatpush.msra.mxu0 0.0
    %358 = vmatpush.msra.mxu0 0.0
    %359 = vmatpush.msra.mxu0 0.0
    %360 = vmatpush.msra.mxu0 0.0
    %361 = vmatpush.msra.mxu0 0.0
    %362 = vmatpush.msra.mxu0 0.0
    %363 = vmatpush.msra.mxu0 0.0
    %364 = vmatpush.msra.mxu0 0.0
    %365 = vmatpush.msra.mxu0 0.0
    %366 = vmatpush.msra.mxu0 %v27
    %367 = vmatmul.f32.gmra.mxu0 %v346
    %v368 = vpop.f32.mrf.mxu0
    %v369 = vadd.f32 0.0, %v368
    %370 = vmatmul.f32.gmra.mxu0 %v349
    %v371 = vpop.f32.mrf.mxu0
    %v372 = vadd.f32 0.0, %v371
    %373 = vdwg.mxu0
    %374 = vmatpush.msra.mxu0 0.0
    %375 = vmatpush.msra.mxu0 0.0
    %376 = vmatpush.msra.mxu0 0.0
    %377 = vmatpush.msra.mxu0 0.0
    %378 = vmatpush.msra.mxu0 0.0
    %379 = vmatpush.msra.mxu0 0.0
    %380 = vmatpush.msra.mxu0 0.0
    %381 = vmatpush.msra.mxu0 0.0
    %382 = vmatpush.msra.mxu0 0.0
    %383 = vmatpush.msra.mxu0 0.0
    %384 = vmatpush.msra.mxu0 0.0
    %385 = vmatpush.msra.mxu0 0.0
    %386 = vmatpush.msra.mxu0 0.0
    %387 = vmatpush.msra.mxu0 0.0
    %388 = vmatpush.msra.mxu0 0.0
    %389 = vmatpush.msra.mxu0 %v28
    %390 = vmatmul.f32.gmra.mxu0 %v346
    %v391 = vpop.f32.mrf.mxu0
    %v392 = vadd.f32 0.0, %v391
    %393 = vmatmul.f32.gmra.mxu0 %v349
    %v394 = vpop.f32.mrf.mxu0
    %v395 = vadd.f32 0.0, %v394
    %396 = vdwg.mxu0
    %v397 = vadd.f32 %v338, %v369
    %v398 = vadd.f32 %v339, %v392
    %v399 = vadd.f32 %v340, %v372
    %v400 = vadd.f32 %v341, %v395
    %401 = vrot.lane.b32.xlu0 %v70, 127
    %v402 = vpop.permute.xlu0 %401
    %403 = vrot.lane.b32.xlu0 %v71, 127
    %v404 = vpop.permute.xlu0 %403
    %vm405 = vcmask 1039360
    %v406 = vsel %vm405, %v402, %v404
    %v409 = vsel %vm405, %v404, 0.0
    %s410 = scalar_lea.vmem %s1, 80
    %v411 = vld [vmem:[%s410] sm:$0xff]
    %v412 = vld [vmem:[%s410 + $0x8] sm:$0xff]
    %v414 = vsel %vm99, %v411, 0
    %v417 = vsel %vm99, %v412, 0
    %419 = vmatpush.msra.mxu0 0.0
    %420 = vmatpush.msra.mxu0 0.0
    %421 = vmatpush.msra.mxu0 0.0
    %422 = vmatpush.msra.mxu0 0.0
    %423 = vmatpush.msra.mxu0 0.0
    %424 = vmatpush.msra.mxu0 0.0
    %425 = vmatpush.msra.mxu0 0.0
    %426 = vmatpush.msra.mxu0 0.0
    %427 = vmatpush.msra.mxu0 0.0
    %428 = vmatpush.msra.mxu0 0.0
    %429 = vmatpush.msra.mxu0 0.0
    %430 = vmatpush.msra.mxu0 0.0
    %431 = vmatpush.msra.mxu0 0.0
    %432 = vmatpush.msra.mxu0 0.0
    %433 = vmatpush.msra.mxu0 0.0
    %434 = vmatpush.msra.mxu0 %v406
    %435 = vmatmul.f32.gmra.mxu0 %v414
    %v436 = vpop.f32.mrf.mxu0
    %v437 = vadd.f32 0.0, %v436
    %438 = vmatmul.f32.gmra.mxu0 %v417
    %v439 = vpop.f32.mrf.mxu0
    %v440 = vadd.f32 0.0, %v439
    %441 = vdwg.mxu0
    %442 = vmatpush.msra.mxu0 0.0
    %443 = vmatpush.msra.mxu0 0.0
    %444 = vmatpush.msra.mxu0 0.0
    %445 = vmatpush.msra.mxu0 0.0
    %446 = vmatpush.msra.mxu0 0.0
    %447 = vmatpush.msra.mxu0 0.0
    %448 = vmatpush.msra.mxu0 0.0
    %449 = vmatpush.msra.mxu0 0.0
    %450 = vmatpush.msra.mxu0 0.0
    %451 = vmatpush.msra.mxu0 0.0
    %452 = vmatpush.msra.mxu0 0.0
    %453 = vmatpush.msra.mxu0 0.0
    %454 = vmatpush.msra.mxu0 0.0
    %455 = vmatpush.msra.mxu0 0.0
    %456 = vmatpush.msra.mxu0 0.0
    %457 = vmatpush.msra.mxu0 %v409
    %458 = vmatmul.f32.gmra.mxu0 %v414
    %v459 = vpop.f32.mrf.mxu0
    %v460 = vadd.f32 0.0, %v459
    %461 = vmatmul.f32.gmra.mxu0 %v417
    %v462 = vpop.f32.mrf.mxu0
    %v463 = vadd.f32 0.0, %v462
    %464 = vdwg.mxu0
    %v465 = vadd.f32 %v397, %v437
    %v466 = vadd.f32 %v398, %v460
    %v467 = vadd.f32 %v399, %v440
    %v468 = vadd.f32 %v400, %v463
    %469 = vrot.lane.b32.xlu0 %v68, 113
    %v470 = vpop.permute.xlu0 %469
    %471 = vrot.lane.b32.xlu0 %v69, 113
    %v472 = vpop.permute.xlu0 %471
    %vm473 = vcmask 924672
    %v474 = vsel %vm473, %v470, %v472
    %v477 = vsel %vm473, %v472, 0.0
    %s478 = scalar_lea.vmem %s1, 96
    %v479 = vld [vmem:[%s478] sm:$0xff]
    %v480 = vld [vmem:[%s478 + $0x8] sm:$0xff]
    %v482 = vsel %vm99, %v479, 0
    %v485 = vsel %vm99, %v480, 0
    %487 = vmatpush.msra.mxu0 0.0
    %488 = vmatpush.msra.mxu0 0.0
    %489 = vmatpush.msra.mxu0 0.0
    %490 = vmatpush.msra.mxu0 0.0
    %491 = vmatpush.msra.mxu0 0.0
    %492 = vmatpush.msra.mxu0 0.0
    %493 = vmatpush.msra.mxu0 0.0
    %494 = vmatpush.msra.mxu0 0.0
    %495 = vmatpush.msra.mxu0 0.0
    %496 = vmatpush.msra.mxu0 0.0
    %497 = vmatpush.msra.mxu0 0.0
    %498 = vmatpush.msra.mxu0 0.0
    %499 = vmatpush.msra.mxu0 0.0
    %500 = vmatpush.msra.mxu0 0.0
    %501 = vmatpush.msra.mxu0 0.0
    %502 = vmatpush.msra.mxu0 %v474
    %503 = vmatmul.f32.gmra.mxu0 %v482
    %v504 = vpop.f32.mrf.mxu0
    %v505 = vadd.f32 0.0, %v504
    %506 = vmatmul.f32.gmra.mxu0 %v485
    %v507 = vpop.f32.mrf.mxu0
    %v508 = vadd.f32 0.0, %v507
    %509 = vdwg.mxu0
    %510 = vmatpush.msra.mxu0 0.0
    %511 = vmatpush.msra.mxu0 0.0
    %512 = vmatpush.msra.mxu0 0.0
    %513 = vmatpush.msra.mxu0 0.0
    %514 = vmatpush.msra.mxu0 0.0
    %515 = vmatpush.msra.mxu0 0.0
    %516 = vmatpush.msra.mxu0 0.0
    %517 = vmatpush.msra.mxu0 0.0
    %518 = vmatpush.msra.mxu0 0.0
    %519 = vmatpush.msra.mxu0 0.0
    %520 = vmatpush.msra.mxu0 0.0
    %521 = vmatpush.msra.mxu0 0.0
    %522 = vmatpush.msra.mxu0 0.0
    %523 = vmatpush.msra.mxu0 0.0
    %524 = vmatpush.msra.mxu0 0.0
    %525 = vmatpush.msra.mxu0 %v477
    %526 = vmatmul.f32.gmra.mxu0 %v482
    %v527 = vpop.f32.mrf.mxu0
    %v528 = vadd.f32 0.0, %v527
    %529 = vmatmul.f32.gmra.mxu0 %v485
    %v530 = vpop.f32.mrf.mxu0
    %v531 = vadd.f32 0.0, %v530
    %532 = vdwg.mxu0
    %v533 = vadd.f32 %v465, %v505
    %v534 = vadd.f32 %v466, %v528
    %v535 = vadd.f32 %v467, %v508
    %v536 = vadd.f32 %v468, %v531
    %537 = vrot.lane.b32.xlu0 %v27, 112
    %v538 = vpop.permute.xlu0 %537
    %539 = vrot.lane.b32.xlu0 %v28, 112
    %v540 = vpop.permute.xlu0 %539
    %vm541 = vcmask 916480
    %v542 = vsel %vm541, %v538, %v540
    %v545 = vsel %vm541, %v540, 0.0
    %s546 = scalar_lea.vmem %s1, 112
    %v547 = vld [vmem:[%s546] sm:$0xff]
    %v548 = vld [vmem:[%s546 + $0x8] sm:$0xff]
    %v550 = vsel %vm99, %v547, 0
    %v553 = vsel %vm99, %v548, 0
    %555 = vmatpush.msra.mxu0 0.0
    %556 = vmatpush.msra.mxu0 0.0
    %557 = vmatpush.msra.mxu0 0.0
    %558 = vmatpush.msra.mxu0 0.0
    %559 = vmatpush.msra.mxu0 0.0
    %560 = vmatpush.msra.mxu0 0.0
    %561 = vmatpush.msra.mxu0 0.0
    %562 = vmatpush.msra.mxu0 0.0
    %563 = vmatpush.msra.mxu0 0.0
    %564 = vmatpush.msra.mxu0 0.0
    %565 = vmatpush.msra.mxu0 0.0
    %566 = vmatpush.msra.mxu0 0.0
    %567 = vmatpush.msra.mxu0 0.0
    %568 = vmatpush.msra.mxu0 0.0
    %569 = vmatpush.msra.mxu0 0.0
    %570 = vmatpush.msra.mxu0 %v542
    %571 = vmatmul.f32.gmra.mxu0 %v550
    %v572 = vpop.f32.mrf.mxu0
    %v573 = vadd.f32 0.0, %v572
    %574 = vmatmul.f32.gmra.mxu0 %v553
    %v575 = vpop.f32.mrf.mxu0
    %v576 = vadd.f32 0.0, %v575
    %577 = vdwg.mxu0
    %578 = vmatpush.msra.mxu0 0.0
    %579 = vmatpush.msra.mxu0 0.0
    %580 = vmatpush.msra.mxu0 0.0
    %581 = vmatpush.msra.mxu0 0.0
    %582 = vmatpush.msra.mxu0 0.0
    %583 = vmatpush.msra.mxu0 0.0
    %584 = vmatpush.msra.mxu0 0.0
    %585 = vmatpush.msra.mxu0 0.0
    %586 = vmatpush.msra.mxu0 0.0
    %587 = vmatpush.msra.mxu0 0.0
    %588 = vmatpush.msra.mxu0 0.0
    %589 = vmatpush.msra.mxu0 0.0
    %590 = vmatpush.msra.mxu0 0.0
    %591 = vmatpush.msra.mxu0 0.0
    %592 = vmatpush.msra.mxu0 0.0
    %593 = vmatpush.msra.mxu0 %v545
    %594 = vmatmul.f32.gmra.mxu0 %v550
    %v595 = vpop.f32.mrf.mxu0
    %v596 = vadd.f32 0.0, %v595
    %597 = vmatmul.f32.gmra.mxu0 %v553
    %v598 = vpop.f32.mrf.mxu0
    %v599 = vadd.f32 0.0, %v598
    %600 = vdwg.mxu0
    %v601 = vadd.f32 %v533, %v573
    %v602 = vadd.f32 %v534, %v596
    %v603 = vadd.f32 %v535, %v576
    %v604 = vadd.f32 %v536, %v599
    %605 = vrot.lane.b32.xlu0 %v70, 111
    %v606 = vpop.permute.xlu0 %605
    %607 = vrot.lane.b32.xlu0 %v71, 111
    %v608 = vpop.permute.xlu0 %607
    %vm609 = vcmask 908288
    %v610 = vsel %vm609, %v606, %v608
    %v613 = vsel %vm609, %v608, 0.0
    %s614 = scalar_lea.vmem %s1, 128
    %v615 = vld [vmem:[%s614] sm:$0xff]
    %v616 = vld [vmem:[%s614 + $0x8] sm:$0xff]
    %v618 = vsel %vm99, %v615, 0
    %v621 = vsel %vm99, %v616, 0
    %623 = vmatpush.msra.mxu0 0.0
    %624 = vmatpush.msra.mxu0 0.0
    %625 = vmatpush.msra.mxu0 0.0
    %626 = vmatpush.msra.mxu0 0.0
    %627 = vmatpush.msra.mxu0 0.0
    %628 = vmatpush.msra.mxu0 0.0
    %629 = vmatpush.msra.mxu0 0.0
    %630 = vmatpush.msra.mxu0 0.0
    %631 = vmatpush.msra.mxu0 0.0
    %632 = vmatpush.msra.mxu0 0.0
    %633 = vmatpush.msra.mxu0 0.0
    %634 = vmatpush.msra.mxu0 0.0
    %635 = vmatpush.msra.mxu0 0.0
    %636 = vmatpush.msra.mxu0 0.0
    %637 = vmatpush.msra.mxu0 0.0
    %638 = vmatpush.msra.mxu0 %v610
    %639 = vmatmul.f32.gmra.mxu0 %v618
    %v640 = vpop.f32.mrf.mxu0
    %v641 = vadd.f32 0.0, %v640
    %642 = vmatmul.f32.gmra.mxu0 %v621
    %v643 = vpop.f32.mrf.mxu0
    %v644 = vadd.f32 0.0, %v643
    %645 = vdwg.mxu0
    %646 = vmatpush.msra.mxu0 0.0
    %647 = vmatpush.msra.mxu0 0.0
    %648 = vmatpush.msra.mxu0 0.0
    %649 = vmatpush.msra.mxu0 0.0
    %650 = vmatpush.msra.mxu0 0.0
    %651 = vmatpush.msra.mxu0 0.0
    %652 = vmatpush.msra.mxu0 0.0
    %653 = vmatpush.msra.mxu0 0.0
    %654 = vmatpush.msra.mxu0 0.0
    %655 = vmatpush.msra.mxu0 0.0
    %656 = vmatpush.msra.mxu0 0.0
    %657 = vmatpush.msra.mxu0 0.0
    %658 = vmatpush.msra.mxu0 0.0
    %659 = vmatpush.msra.mxu0 0.0
    %660 = vmatpush.msra.mxu0 0.0
    %661 = vmatpush.msra.mxu0 %v613
    %662 = vmatmul.f32.gmra.mxu0 %v618
    %v663 = vpop.f32.mrf.mxu0
    %v664 = vadd.f32 0.0, %v663
    %665 = vmatmul.f32.gmra.mxu0 %v621
    %v666 = vpop.f32.mrf.mxu0
    %v667 = vadd.f32 0.0, %v666
    %668 = vdwg.mxu0
    %v669 = vadd.f32 %v601, %v641
    %v670 = vadd.f32 %v602, %v664
    %v671 = vadd.f32 %v603, %v644
    %v672 = vadd.f32 %v604, %v667
    %v673 = vld [vmem:[%s2] sm:$0xff]
    %v674 = vld [vmem:[%s3] sm:$0xff]
    %v675 = vadd.f32 %v669, %v670
    %676 = vadd.xlane.f32.xlu0 %v675
    %v677 = vpop.xlane.xlu0 %676
    %v678 = vadd.f32 %v671, %v672
    %679 = vadd.xlane.f32.xlu0 %v678
    %v680 = vpop.xlane.xlu0 %679
    %v681 = vmul.f32 %v669, %v669
    %v682 = vmul.f32 %v670, %v670
    %v683 = vmul.f32 %v671, %v671
    %v684 = vmul.f32 %v672, %v672
    %v685 = vadd.f32 %v681, %v682
    %686 = vadd.xlane.f32.xlu0 %v685
    %v687 = vpop.xlane.xlu0 %686
    %v688 = vadd.f32 %v683, %v684
    %689 = vadd.xlane.f32.xlu0 %v688
    %v690 = vpop.xlane.xlu0 %689
    %v691 = vadd.f32 %v677, %v680
    %v692 = vadd.f32 %v687, %v690
    %v693 = vmul.f32 %v691, 0.001953125
    %v694 = vmul.f32 %v692, 0.001953125
    %v695 = vmul.f32 %v693, %v693
    %v696 = vsub.f32 %v694, %v695
    %v697 = vmax.f32 %v696, 0.0
    %v698 = vadd.f32 %v697, 1e-05
    %v699 = vrsqrt.pop %v698
    %v700 = vmul.f32 %v699, %v698
    %v701 = vmul.f32 %v700, %v699
    %v702 = vmul.f32 0.5, %v701
    %v703 = vsub.f32 1.5, %v702
    %v704 = vmul.f32 %v699, %v703
    %vm705 = vweird.f32 %v698
    %vm706 = vweird.f32 %v699
    %vm707 = vmor %vm705, %vm706
    %v708 = vsel %vm707, %v699, %v704
    %v709 = vmul.f32 %v673, %v708
    %v710 = vmul.f32 %v693, %v709
    %v711 = vsub.f32 %v674, %v710
    %713 = vset.pattern.permute.xlu0 0
    %714 = vperm.xlu0 %713, %v709
    %v715 = vpop.permute.xlu0 %714
    %v717 = vmul.f32 %v669, %v715
    %v718 = vmul.f32 %v670, %v715
    %v719 = vmul.f32 %v671, %v715
    %v720 = vmul.f32 %v672, %v715
    %722 = vset.pattern.permute.xlu0 0
    %723 = vperm.xlu0 %722, %v711
    %v724 = vpop.permute.xlu0 %723
    %v726 = vadd.f32 %v717, %v724
    %v727 = vadd.f32 %v718, %v724
    %v728 = vadd.f32 %v719, %v724
    %v729 = vadd.f32 %v720, %v724
    %v730 = vmax.f32 %v726, 0.0
    %v731 = vmax.f32 %v727, 0.0
    %v732 = vmax.f32 %v728, 0.0
    %v733 = vmax.f32 %v729, 0.0
    %v734 = vmul.f32 %v730, %v66
    %v735 = vmul.f32 %v731, %v67
    %v736 = vmul.f32 %v732, %v66
    %v737 = vmul.f32 %v733, %v67
    %v738 = vmul.f32 %v730, %v60
    %v739 = vmul.f32 %v731, %v61
    %v740 = vmul.f32 %v732, %v60
    %v741 = vmul.f32 %v733, %v61
    %746 = vrot.lane.b32.xlu0 %v734, 17
    %v747 = vpop.permute.xlu0 %746
    %748 = vrot.lane.b32.xlu0 %v735, 17
    %v749 = vpop.permute.xlu0 %748
    %750 = vrot.lane.b32.xlu0 %v736, 17
    %v751 = vpop.permute.xlu0 %750
    %752 = vrot.lane.b32.xlu0 %v737, 17
    %v753 = vpop.permute.xlu0 %752
    %v754 = vsel %vm78, %v747, %v749
    %v755 = vsel %vm78, %v751, %v753
    %v760 = vsel %vm78, 0.0, %v747
    %v761 = vsel %vm78, 0.0, %v751
    %v762 = vld [vmem:[%s4] sm:$0xff]
    %767 = vrot.lane.b32.xlu0 %v730, 16
    %v768 = vpop.permute.xlu0 %767
    %769 = vrot.lane.b32.xlu0 %v731, 16
    %v770 = vpop.permute.xlu0 %769
    %771 = vrot.lane.b32.xlu0 %v732, 16
    %v772 = vpop.permute.xlu0 %771
    %773 = vrot.lane.b32.xlu0 %v733, 16
    %v774 = vpop.permute.xlu0 %773
    %v775 = vsel %vm91, %v768, %v770
    %v776 = vsel %vm91, %v772, %v774
    %v781 = vsel %vm91, 0.0, %v768
    %v782 = vsel %vm91, 0.0, %v772
    %s783 = scalar_lea.vmem %s4, 8
    %v784 = vld [vmem:[%s783] sm:$0xff]
    %v786 = vsel %vm91, %v784, 0
    %788 = vmatpush.msra.mxu0 0.0
    %789 = vmatpush.msra.mxu0 0.0
    %790 = vmatpush.msra.mxu0 0.0
    %791 = vmatpush.msra.mxu0 0.0
    %792 = vmatpush.msra.mxu0 0.0
    %793 = vmatpush.msra.mxu0 0.0
    %794 = vmatpush.msra.mxu0 0.0
    %795 = vmatpush.msra.mxu0 0.0
    %796 = vmatpush.msra.mxu0 0.0
    %797 = vmatpush.msra.mxu0 0.0
    %798 = vmatpush.msra.mxu0 0.0
    %799 = vmatpush.msra.mxu0 0.0
    %800 = vmatpush.msra.mxu0 0.0
    %801 = vmatpush.msra.mxu0 0.0
    %802 = vmatpush.msra.mxu0 %v782
    %803 = vmatpush.msra.mxu0 %v781
    %804 = vmatmul.f32.gmra.mxu0 %v786
    %v805 = vpop.f32.mrf.mxu0
    %v806 = vadd.f32 0.0, %v805
    %807 = vdwg.mxu0
    %808 = vmatpush.msra.mxu0 0.0
    %809 = vmatpush.msra.mxu0 0.0
    %810 = vmatpush.msra.mxu0 0.0
    %811 = vmatpush.msra.mxu0 0.0
    %812 = vmatpush.msra.mxu0 0.0
    %813 = vmatpush.msra.mxu0 0.0
    %814 = vmatpush.msra.mxu0 0.0
    %815 = vmatpush.msra.mxu0 0.0
    %816 = vmatpush.msra.mxu0 0.0
    %817 = vmatpush.msra.mxu0 0.0
    %818 = vmatpush.msra.mxu0 0.0
    %819 = vmatpush.msra.mxu0 0.0
    %820 = vmatpush.msra.mxu0 0.0
    %821 = vmatpush.msra.mxu0 0.0
    %822 = vmatpush.msra.mxu0 %v776
    %823 = vmatpush.msra.mxu0 %v775
    %824 = vmatmul.f32.gmra.mxu0 %v786
    %v825 = vpop.f32.mrf.mxu0
    %v826 = vadd.f32 0.0, %v825
    %827 = vdwg.mxu0
    %v829 = vsel %vm91, %v762, 0
    %831 = vmatpush.msra.mxu0 0.0
    %832 = vmatpush.msra.mxu0 0.0
    %833 = vmatpush.msra.mxu0 0.0
    %834 = vmatpush.msra.mxu0 0.0
    %835 = vmatpush.msra.mxu0 0.0
    %836 = vmatpush.msra.mxu0 0.0
    %837 = vmatpush.msra.mxu0 0.0
    %838 = vmatpush.msra.mxu0 0.0
    %839 = vmatpush.msra.mxu0 0.0
    %840 = vmatpush.msra.mxu0 0.0
    %841 = vmatpush.msra.mxu0 0.0
    %842 = vmatpush.msra.mxu0 0.0
    %843 = vmatpush.msra.mxu0 0.0
    %844 = vmatpush.msra.mxu0 0.0
    %845 = vmatpush.msra.mxu0 %v761
    %846 = vmatpush.msra.mxu0 %v760
    %847 = vmatmul.f32.gmra.mxu0 %v829
    %v848 = vpop.f32.mrf.mxu0
    %v849 = vadd.f32 %v806, %v848
    %850 = vdwg.mxu0
    %851 = vmatpush.msra.mxu0 0.0
    %852 = vmatpush.msra.mxu0 0.0
    %853 = vmatpush.msra.mxu0 0.0
    %854 = vmatpush.msra.mxu0 0.0
    %855 = vmatpush.msra.mxu0 0.0
    %856 = vmatpush.msra.mxu0 0.0
    %857 = vmatpush.msra.mxu0 0.0
    %858 = vmatpush.msra.mxu0 0.0
    %859 = vmatpush.msra.mxu0 0.0
    %860 = vmatpush.msra.mxu0 0.0
    %861 = vmatpush.msra.mxu0 0.0
    %862 = vmatpush.msra.mxu0 0.0
    %863 = vmatpush.msra.mxu0 0.0
    %864 = vmatpush.msra.mxu0 0.0
    %865 = vmatpush.msra.mxu0 %v755
    %866 = vmatpush.msra.mxu0 %v754
    %867 = vmatmul.f32.gmra.mxu0 %v829
    %v868 = vpop.f32.mrf.mxu0
    %v869 = vadd.f32 %v826, %v868
    %870 = vdwg.mxu0
    %875 = vrot.lane.b32.xlu0 %v738, 15
    %v876 = vpop.permute.xlu0 %875
    %877 = vrot.lane.b32.xlu0 %v739, 15
    %v878 = vpop.permute.xlu0 %877
    %879 = vrot.lane.b32.xlu0 %v740, 15
    %v880 = vpop.permute.xlu0 %879
    %881 = vrot.lane.b32.xlu0 %v741, 15
    %v882 = vpop.permute.xlu0 %881
    %v883 = vsel %vm210, %v876, %v878
    %v884 = vsel %vm210, %v880, %v882
    %v889 = vsel %vm210, 0.0, %v876
    %v890 = vsel %vm210, 0.0, %v880
    %s891 = scalar_lea.vmem %s4, 16
    %v892 = vld [vmem:[%s891] sm:$0xff]
    %v894 = vsel %vm91, %v892, 0
    %896 = vmatpush.msra.mxu0 0.0
    %897 = vmatpush.msra.mxu0 0.0
    %898 = vmatpush.msra.mxu0 0.0
    %899 = vmatpush.msra.mxu0 0.0
    %900 = vmatpush.msra.mxu0 0.0
    %901 = vmatpush.msra.mxu0 0.0
    %902 = vmatpush.msra.mxu0 0.0
    %903 = vmatpush.msra.mxu0 0.0
    %904 = vmatpush.msra.mxu0 0.0
    %905 = vmatpush.msra.mxu0 0.0
    %906 = vmatpush.msra.mxu0 0.0
    %907 = vmatpush.msra.mxu0 0.0
    %908 = vmatpush.msra.mxu0 0.0
    %909 = vmatpush.msra.mxu0 0.0
    %910 = vmatpush.msra.mxu0 %v890
    %911 = vmatpush.msra.mxu0 %v889
    %912 = vmatmul.f32.gmra.mxu0 %v894
    %v913 = vpop.f32.mrf.mxu0
    %v914 = vadd.f32 0.0, %v913
    %915 = vdwg.mxu0
    %916 = vmatpush.msra.mxu0 0.0
    %917 = vmatpush.msra.mxu0 0.0
    %918 = vmatpush.msra.mxu0 0.0
    %919 = vmatpush.msra.mxu0 0.0
    %920 = vmatpush.msra.mxu0 0.0
    %921 = vmatpush.msra.mxu0 0.0
    %922 = vmatpush.msra.mxu0 0.0
    %923 = vmatpush.msra.mxu0 0.0
    %924 = vmatpush.msra.mxu0 0.0
    %925 = vmatpush.msra.mxu0 0.0
    %926 = vmatpush.msra.mxu0 0.0
    %927 = vmatpush.msra.mxu0 0.0
    %928 = vmatpush.msra.mxu0 0.0
    %929 = vmatpush.msra.mxu0 0.0
    %930 = vmatpush.msra.mxu0 %v884
    %931 = vmatpush.msra.mxu0 %v883
    %932 = vmatmul.f32.gmra.mxu0 %v894
    %v933 = vpop.f32.mrf.mxu0
    %v934 = vadd.f32 0.0, %v933
    %935 = vdwg.mxu0
    %v936 = vadd.f32 %v849, %v914
    %v937 = vadd.f32 %v869, %v934
    %938 = vrot.lane.b32.xlu0 %v734, 1
    %v939 = vpop.permute.xlu0 %938
    %940 = vrot.lane.b32.xlu0 %v735, 1
    %v941 = vpop.permute.xlu0 %940
    %942 = vrot.lane.b32.xlu0 %v736, 1
    %v943 = vpop.permute.xlu0 %942
    %944 = vrot.lane.b32.xlu0 %v737, 1
    %v945 = vpop.permute.xlu0 %944
    %v946 = vsel %vm278, %v939, %v941
    %v947 = vsel %vm278, %v943, %v945
    %v952 = vsel %vm278, 0.0, %v939
    %v953 = vsel %vm278, 0.0, %v943
    %s954 = scalar_lea.vmem %s4, 24
    %v955 = vld [vmem:[%s954] sm:$0xff]
    %v957 = vsel %vm91, %v955, 0
    %959 = vmatpush.msra.mxu0 0.0
    %960 = vmatpush.msra.mxu0 0.0
    %961 = vmatpush.msra.mxu0 0.0
    %962 = vmatpush.msra.mxu0 0.0
    %963 = vmatpush.msra.mxu0 0.0
    %964 = vmatpush.msra.mxu0 0.0
    %965 = vmatpush.msra.mxu0 0.0
    %966 = vmatpush.msra.mxu0 0.0
    %967 = vmatpush.msra.mxu0 0.0
    %968 = vmatpush.msra.mxu0 0.0
    %969 = vmatpush.msra.mxu0 0.0
    %970 = vmatpush.msra.mxu0 0.0
    %971 = vmatpush.msra.mxu0 0.0
    %972 = vmatpush.msra.mxu0 0.0
    %973 = vmatpush.msra.mxu0 %v953
    %974 = vmatpush.msra.mxu0 %v952
    %975 = vmatmul.f32.gmra.mxu0 %v957
    %v976 = vpop.f32.mrf.mxu0
    %v977 = vadd.f32 0.0, %v976
    %978 = vdwg.mxu0
    %979 = vmatpush.msra.mxu0 0.0
    %980 = vmatpush.msra.mxu0 0.0
    %981 = vmatpush.msra.mxu0 0.0
    %982 = vmatpush.msra.mxu0 0.0
    %983 = vmatpush.msra.mxu0 0.0
    %984 = vmatpush.msra.mxu0 0.0
    %985 = vmatpush.msra.mxu0 0.0
    %986 = vmatpush.msra.mxu0 0.0
    %987 = vmatpush.msra.mxu0 0.0
    %988 = vmatpush.msra.mxu0 0.0
    %989 = vmatpush.msra.mxu0 0.0
    %990 = vmatpush.msra.mxu0 0.0
    %991 = vmatpush.msra.mxu0 0.0
    %992 = vmatpush.msra.mxu0 0.0
    %993 = vmatpush.msra.mxu0 %v947
    %994 = vmatpush.msra.mxu0 %v946
    %995 = vmatmul.f32.gmra.mxu0 %v957
    %v996 = vpop.f32.mrf.mxu0
    %v997 = vadd.f32 0.0, %v996
    %998 = vdwg.mxu0
    %v999 = vadd.f32 %v936, %v977
    %v1000 = vadd.f32 %v937, %v997
    %s1001 = scalar_lea.vmem %s4, 32
    %v1002 = vld [vmem:[%s1001] sm:$0xff]
    %v1004 = vsel %vm91, %v1002, 0
    %1006 = vmatpush.msra.mxu0 0.0
    %1007 = vmatpush.msra.mxu0 0.0
    %1008 = vmatpush.msra.mxu0 0.0
    %1009 = vmatpush.msra.mxu0 0.0
    %1010 = vmatpush.msra.mxu0 0.0
    %1011 = vmatpush.msra.mxu0 0.0
    %1012 = vmatpush.msra.mxu0 0.0
    %1013 = vmatpush.msra.mxu0 0.0
    %1014 = vmatpush.msra.mxu0 0.0
    %1015 = vmatpush.msra.mxu0 0.0
    %1016 = vmatpush.msra.mxu0 0.0
    %1017 = vmatpush.msra.mxu0 0.0
    %1018 = vmatpush.msra.mxu0 0.0
    %1019 = vmatpush.msra.mxu0 0.0
    %1020 = vmatpush.msra.mxu0 %v732
    %1021 = vmatpush.msra.mxu0 %v730
    %1022 = vmatmul.f32.gmra.mxu0 %v1004
    %v1023 = vpop.f32.mrf.mxu0
    %v1024 = vadd.f32 0.0, %v1023
    %1025 = vdwg.mxu0
    %1026 = vmatpush.msra.mxu0 0.0
    %1027 = vmatpush.msra.mxu0 0.0
    %1028 = vmatpush.msra.mxu0 0.0
    %1029 = vmatpush.msra.mxu0 0.0
    %1030 = vmatpush.msra.mxu0 0.0
    %1031 = vmatpush.msra.mxu0 0.0
    %1032 = vmatpush.msra.mxu0 0.0
    %1033 = vmatpush.msra.mxu0 0.0
    %1034 = vmatpush.msra.mxu0 0.0
    %1035 = vmatpush.msra.mxu0 0.0
    %1036 = vmatpush.msra.mxu0 0.0
    %1037 = vmatpush.msra.mxu0 0.0
    %1038 = vmatpush.msra.mxu0 0.0
    %1039 = vmatpush.msra.mxu0 0.0
    %1040 = vmatpush.msra.mxu0 %v733
    %1041 = vmatpush.msra.mxu0 %v731
    %1042 = vmatmul.f32.gmra.mxu0 %v1004
    %v1043 = vpop.f32.mrf.mxu0
    %v1044 = vadd.f32 0.0, %v1043
    %1045 = vdwg.mxu0
    %v1046 = vadd.f32 %v999, %v1024
    %v1047 = vadd.f32 %v1000, %v1044
    %1048 = vrot.lane.b32.xlu0 %v738, 127
    %v1049 = vpop.permute.xlu0 %1048
    %1050 = vrot.lane.b32.xlu0 %v739, 127
    %v1051 = vpop.permute.xlu0 %1050
    %1052 = vrot.lane.b32.xlu0 %v740, 127
    %v1053 = vpop.permute.xlu0 %1052
    %1054 = vrot.lane.b32.xlu0 %v741, 127
    %v1055 = vpop.permute.xlu0 %1054
    %v1056 = vsel %vm405, %v1049, %v1051
    %v1057 = vsel %vm405, %v1053, %v1055
    %v1062 = vsel %vm405, %v1051, 0.0
    %v1063 = vsel %vm405, %v1055, 0.0
    %s1064 = scalar_lea.vmem %s4, 40
    %v1065 = vld [vmem:[%s1064] sm:$0xff]
    %v1067 = vsel %vm91, %v1065, 0
    %1069 = vmatpush.msra.mxu0 0.0
    %1070 = vmatpush.msra.mxu0 0.0
    %1071 = vmatpush.msra.mxu0 0.0
    %1072 = vmatpush.msra.mxu0 0.0
    %1073 = vmatpush.msra.mxu0 0.0
    %1074 = vmatpush.msra.mxu0 0.0
    %1075 = vmatpush.msra.mxu0 0.0
    %1076 = vmatpush.msra.mxu0 0.0
    %1077 = vmatpush.msra.mxu0 0.0
    %1078 = vmatpush.msra.mxu0 0.0
    %1079 = vmatpush.msra.mxu0 0.0
    %1080 = vmatpush.msra.mxu0 0.0
    %1081 = vmatpush.msra.mxu0 0.0
    %1082 = vmatpush.msra.mxu0 0.0
    %1083 = vmatpush.msra.mxu0 %v1057
    %1084 = vmatpush.msra.mxu0 %v1056
    %1085 = vmatmul.f32.gmra.mxu0 %v1067
    %v1086 = vpop.f32.mrf.mxu0
    %v1087 = vadd.f32 0.0, %v1086
    %1088 = vdwg.mxu0
    %1089 = vmatpush.msra.mxu0 0.0
    %1090 = vmatpush.msra.mxu0 0.0
    %1091 = vmatpush.msra.mxu0 0.0
    %1092 = vmatpush.msra.mxu0 0.0
    %1093 = vmatpush.msra.mxu0 0.0
    %1094 = vmatpush.msra.mxu0 0.0
    %1095 = vmatpush.msra.mxu0 0.0
    %1096 = vmatpush.msra.mxu0 0.0
    %1097 = vmatpush.msra.mxu0 0.0
    %1098 = vmatpush.msra.mxu0 0.0
    %1099 = vmatpush.msra.mxu0 0.0
    %1100 = vmatpush.msra.mxu0 0.0
    %1101 = vmatpush.msra.mxu0 0.0
    %1102 = vmatpush.msra.mxu0 0.0
    %1103 = vmatpush.msra.mxu0 %v1063
    %1104 = vmatpush.msra.mxu0 %v1062
    %1105 = vmatmul.f32.gmra.mxu0 %v1067
    %v1106 = vpop.f32.mrf.mxu0
    %v1107 = vadd.f32 0.0, %v1106
    %1108 = vdwg.mxu0
    %v1109 = vadd.f32 %v1046, %v1087
    %v1110 = vadd.f32 %v1047, %v1107
    %1111 = vrot.lane.b32.xlu0 %v734, 113
    %v1112 = vpop.permute.xlu0 %1111
    %1113 = vrot.lane.b32.xlu0 %v735, 113
    %v1114 = vpop.permute.xlu0 %1113
    %1115 = vrot.lane.b32.xlu0 %v736, 113
    %v1116 = vpop.permute.xlu0 %1115
    %1117 = vrot.lane.b32.xlu0 %v737, 113
    %v1118 = vpop.permute.xlu0 %1117
    %v1119 = vsel %vm473, %v1112, %v1114
    %v1120 = vsel %vm473, %v1116, %v1118
    %v1125 = vsel %vm473, %v1114, 0.0
    %v1126 = vsel %vm473, %v1118, 0.0
    %s1127 = scalar_lea.vmem %s4, 48
    %v1128 = vld [vmem:[%s1127] sm:$0xff]
    %v1130 = vsel %vm91, %v1128, 0
    %1132 = vmatpush.msra.mxu0 0.0
    %1133 = vmatpush.msra.mxu0 0.0
    %1134 = vmatpush.msra.mxu0 0.0
    %1135 = vmatpush.msra.mxu0 0.0
    %1136 = vmatpush.msra.mxu0 0.0
    %1137 = vmatpush.msra.mxu0 0.0
    %1138 = vmatpush.msra.mxu0 0.0
    %1139 = vmatpush.msra.mxu0 0.0
    %1140 = vmatpush.msra.mxu0 0.0
    %1141 = vmatpush.msra.mxu0 0.0
    %1142 = vmatpush.msra.mxu0 0.0
    %1143 = vmatpush.msra.mxu0 0.0
    %1144 = vmatpush.msra.mxu0 0.0
    %1145 = vmatpush.msra.mxu0 0.0
    %1146 = vmatpush.msra.mxu0 %v1120
    %1147 = vmatpush.msra.mxu0 %v1119
    %1148 = vmatmul.f32.gmra.mxu0 %v1130
    %v1149 = vpop.f32.mrf.mxu0
    %v1150 = vadd.f32 0.0, %v1149
    %1151 = vdwg.mxu0
    %1152 = vmatpush.msra.mxu0 0.0
    %1153 = vmatpush.msra.mxu0 0.0
    %1154 = vmatpush.msra.mxu0 0.0
    %1155 = vmatpush.msra.mxu0 0.0
    %1156 = vmatpush.msra.mxu0 0.0
    %1157 = vmatpush.msra.mxu0 0.0
    %1158 = vmatpush.msra.mxu0 0.0
    %1159 = vmatpush.msra.mxu0 0.0
    %1160 = vmatpush.msra.mxu0 0.0
    %1161 = vmatpush.msra.mxu0 0.0
    %1162 = vmatpush.msra.mxu0 0.0
    %1163 = vmatpush.msra.mxu0 0.0
    %1164 = vmatpush.msra.mxu0 0.0
    %1165 = vmatpush.msra.mxu0 0.0
    %1166 = vmatpush.msra.mxu0 %v1126
    %1167 = vmatpush.msra.mxu0 %v1125
    %1168 = vmatmul.f32.gmra.mxu0 %v1130
    %v1169 = vpop.f32.mrf.mxu0
    %v1170 = vadd.f32 0.0, %v1169
    %1171 = vdwg.mxu0
    %v1172 = vadd.f32 %v1109, %v1150
    %v1173 = vadd.f32 %v1110, %v1170
    %1174 = vrot.lane.b32.xlu0 %v730, 112
    %v1175 = vpop.permute.xlu0 %1174
    %1176 = vrot.lane.b32.xlu0 %v731, 112
    %v1177 = vpop.permute.xlu0 %1176
    %1178 = vrot.lane.b32.xlu0 %v732, 112
    %v1179 = vpop.permute.xlu0 %1178
    %1180 = vrot.lane.b32.xlu0 %v733, 112
    %v1181 = vpop.permute.xlu0 %1180
    %v1182 = vsel %vm541, %v1175, %v1177
    %v1183 = vsel %vm541, %v1179, %v1181
    %v1188 = vsel %vm541, %v1177, 0.0
    %v1189 = vsel %vm541, %v1181, 0.0
    %s1190 = scalar_lea.vmem %s4, 56
    %v1191 = vld [vmem:[%s1190] sm:$0xff]
    %v1193 = vsel %vm91, %v1191, 0
    %1195 = vmatpush.msra.mxu0 0.0
    %1196 = vmatpush.msra.mxu0 0.0
    %1197 = vmatpush.msra.mxu0 0.0
    %1198 = vmatpush.msra.mxu0 0.0
    %1199 = vmatpush.msra.mxu0 0.0
    %1200 = vmatpush.msra.mxu0 0.0
    %1201 = vmatpush.msra.mxu0 0.0
    %1202 = vmatpush.msra.mxu0 0.0
    %1203 = vmatpush.msra.mxu0 0.0
    %1204 = vmatpush.msra.mxu0 0.0
    %1205 = vmatpush.msra.mxu0 0.0
    %1206 = vmatpush.msra.mxu0 0.0
    %1207 = vmatpush.msra.mxu0 0.0
    %1208 = vmatpush.msra.mxu0 0.0
    %1209 = vmatpush.msra.mxu0 %v1183
    %1210 = vmatpush.msra.mxu0 %v1182
    %1211 = vmatmul.f32.gmra.mxu0 %v1193
    %v1212 = vpop.f32.mrf.mxu0
    %v1213 = vadd.f32 0.0, %v1212
    %1214 = vdwg.mxu0
    %1215 = vmatpush.msra.mxu0 0.0
    %1216 = vmatpush.msra.mxu0 0.0
    %1217 = vmatpush.msra.mxu0 0.0
    %1218 = vmatpush.msra.mxu0 0.0
    %1219 = vmatpush.msra.mxu0 0.0
    %1220 = vmatpush.msra.mxu0 0.0
    %1221 = vmatpush.msra.mxu0 0.0
    %1222 = vmatpush.msra.mxu0 0.0
    %1223 = vmatpush.msra.mxu0 0.0
    %1224 = vmatpush.msra.mxu0 0.0
    %1225 = vmatpush.msra.mxu0 0.0
    %1226 = vmatpush.msra.mxu0 0.0
    %1227 = vmatpush.msra.mxu0 0.0
    %1228 = vmatpush.msra.mxu0 0.0
    %1229 = vmatpush.msra.mxu0 %v1189
    %1230 = vmatpush.msra.mxu0 %v1188
    %1231 = vmatmul.f32.gmra.mxu0 %v1193
    %v1232 = vpop.f32.mrf.mxu0
    %v1233 = vadd.f32 0.0, %v1232
    %1234 = vdwg.mxu0
    %v1235 = vadd.f32 %v1172, %v1213
    %v1236 = vadd.f32 %v1173, %v1233
    %1237 = vrot.lane.b32.xlu0 %v738, 111
    %v1238 = vpop.permute.xlu0 %1237
    %1239 = vrot.lane.b32.xlu0 %v739, 111
    %v1240 = vpop.permute.xlu0 %1239
    %1241 = vrot.lane.b32.xlu0 %v740, 111
    %v1242 = vpop.permute.xlu0 %1241
    %1243 = vrot.lane.b32.xlu0 %v741, 111
    %v1244 = vpop.permute.xlu0 %1243
    %v1245 = vsel %vm609, %v1238, %v1240
    %v1246 = vsel %vm609, %v1242, %v1244
    %v1251 = vsel %vm609, %v1240, 0.0
    %v1252 = vsel %vm609, %v1244, 0.0
    %s1253 = scalar_lea.vmem %s4, 64
    %v1254 = vld [vmem:[%s1253] sm:$0xff]
    %v1256 = vsel %vm91, %v1254, 0
    %1258 = vmatpush.msra.mxu0 0.0
    %1259 = vmatpush.msra.mxu0 0.0
    %1260 = vmatpush.msra.mxu0 0.0
    %1261 = vmatpush.msra.mxu0 0.0
    %1262 = vmatpush.msra.mxu0 0.0
    %1263 = vmatpush.msra.mxu0 0.0
    %1264 = vmatpush.msra.mxu0 0.0
    %1265 = vmatpush.msra.mxu0 0.0
    %1266 = vmatpush.msra.mxu0 0.0
    %1267 = vmatpush.msra.mxu0 0.0
    %1268 = vmatpush.msra.mxu0 0.0
    %1269 = vmatpush.msra.mxu0 0.0
    %1270 = vmatpush.msra.mxu0 0.0
    %1271 = vmatpush.msra.mxu0 0.0
    %1272 = vmatpush.msra.mxu0 %v1246
    %1273 = vmatpush.msra.mxu0 %v1245
    %1274 = vmatmul.f32.gmra.mxu0 %v1256
    %v1275 = vpop.f32.mrf.mxu0
    %v1276 = vadd.f32 0.0, %v1275
    %1277 = vdwg.mxu0
    %1278 = vmatpush.msra.mxu0 0.0
    %1279 = vmatpush.msra.mxu0 0.0
    %1280 = vmatpush.msra.mxu0 0.0
    %1281 = vmatpush.msra.mxu0 0.0
    %1282 = vmatpush.msra.mxu0 0.0
    %1283 = vmatpush.msra.mxu0 0.0
    %1284 = vmatpush.msra.mxu0 0.0
    %1285 = vmatpush.msra.mxu0 0.0
    %1286 = vmatpush.msra.mxu0 0.0
    %1287 = vmatpush.msra.mxu0 0.0
    %1288 = vmatpush.msra.mxu0 0.0
    %1289 = vmatpush.msra.mxu0 0.0
    %1290 = vmatpush.msra.mxu0 0.0
    %1291 = vmatpush.msra.mxu0 0.0
    %1292 = vmatpush.msra.mxu0 %v1252
    %1293 = vmatpush.msra.mxu0 %v1251
    %1294 = vmatmul.f32.gmra.mxu0 %v1256
    %v1295 = vpop.f32.mrf.mxu0
    %v1296 = vadd.f32 0.0, %v1295
    %1297 = vdwg.mxu0
    %v1298 = vadd.f32 %v1235, %v1276
    %v1299 = vadd.f32 %v1236, %v1296
    %v1300 = vld [vmem:[%s5] sm:$0xf]
    %v1301 = vld [vmem:[%s6] sm:$0xf]
    %v1302 = vadd.f32 %v1298, %v1299
    %1303 = vadd.xlane.f32.xlu0 %v1302
    %v1304 = vpop.xlane.xlu0 %1303
    %v1305 = vmul.f32 %v1298, %v1298
    %v1306 = vmul.f32 %v1299, %v1299
    %v1307 = vadd.f32 %v1305, %v1306
    %1308 = vadd.xlane.f32.xlu0 %v1307
    %v1309 = vpop.xlane.xlu0 %1308
    %v1311 = vrot.slane %v1304, 4
    %v1313 = vadd.f32 %v1304, %v1311
    %v1315 = vrot.slane %v1309, 4
    %v1317 = vadd.f32 %v1309, %v1315
    %v1318 = vmul.f32 %v1313, 0.001953125
    %v1319 = vmul.f32 %v1317, 0.001953125
    %v1320 = vmul.f32 %v1318, %v1318
    %v1321 = vsub.f32 %v1319, %v1320
    %v1322 = vmax.f32 %v1321, 0.0
    %v1323 = vadd.f32 %v1322, 1e-05
    %v1324 = vrsqrt.pop %v1323
    %v1325 = vmul.f32 %v1324, %v1323
    %v1326 = vmul.f32 %v1325, %v1324
    %v1327 = vmul.f32 0.5, %v1326
    %v1328 = vsub.f32 1.5, %v1327
    %v1329 = vmul.f32 %v1324, %v1328
    %vm1330 = vweird.f32 %v1323
    %vm1331 = vweird.f32 %v1324
    %vm1332 = vmor %vm1330, %vm1331
    %v1333 = vsel %vm1332, %v1324, %v1329
    %v1334 = vmul.f32 %v1300, %v1333
    %v1335 = vmul.f32 %v1318, %v1334
    %v1336 = vsub.f32 %v1301, %v1335
    %v1338 = vrot.slane %v1334, 4
    %vm1340 = vcmask 1043456
    %v1341 = vsel %vm1340, %v1334, %v1338
    %v1343 = vrot.slane %v1336, 4
    %v1345 = vsel %vm1340, %v1336, %v1343
    %1347 = vset.pattern.permute.xlu0 0
    %1348 = vperm.xlu0 %1347, %v1341
    %v1349 = vpop.permute.xlu0 %1348
    %v1351 = vmul.f32 %v1298, %v1349
    %v1352 = vmul.f32 %v1299, %v1349
    %1354 = vset.pattern.permute.xlu0 0
    %1355 = vperm.xlu0 %1354, %v1345
    %v1356 = vpop.permute.xlu0 %1355
    %v1358 = vadd.f32 %v1351, %v1356
    %v1359 = vadd.f32 %v1352, %v1356
    %v1360 = vadd.f32 %v1358, %v27
    %v1361 = vadd.f32 %v1359, %v28
    %v1362 = vmax.f32 %v1360, 0.0
    %v1363 = vmax.f32 %v1361, 0.0
    %1364 = vst [vmem:[#allocation2] sm:$0xff] %v1362
    %1365 = vst [vmem:[#allocation2 + $0x8] sm:$0xff] %v1363
    // Predicated region
    $region30: #{tpu_custom_call.1} parent=1 // pred_check
      _
    $region31: #{tpu_custom_call.1} parent=1 // pred_check_branch
      %1367 = sbr.rel (0) target = $region33
    $region32: #{tpu_custom_call.1} parent=1 // pred_region
      %1369 = vsyncadd [#allocation3], 0
      %s1371 = sshll.u32 [#allocation2], 4
      %s1372 = int_to_ptr.vmem [resolvable:$true] %s1371
      %s1373 = sshll.u32 %s7, 4
      %s1374 = int_to_ptr.hbm [resolvable:$true] %s1373
      %1376 = dma.vmem_to_hbm [thread:$0]  %s1372, 256, %s1374, [#allocation3]
    $region33: #{tpu_custom_call.1} parent=1 // pred_fallthru
      _
    // Predicated region
    $region34: #{tpu_custom_call.1} parent=1 // pred_check
      _
    $region35: #{tpu_custom_call.1} parent=1 // pred_check_branch
      %1378 = sbr.rel (0) target = $region37
    $region36: #{tpu_custom_call.1} parent=1 // pred_region
      %1380 = dma.done [#allocation3], 256
    $region37: #{tpu_custom_call.1} parent=1 // pred_fallthru
      _
    %1381 = vsyncpa [#allocation3], 1

</llo_original>
